<compile_context>
chip_gen: v5e
topology: v5e:2x2
jax: 0.10.0
libtpu: 0.0.40
codegen_flags: <defaults>
</compile_context>

<pallas_src>
import jax
import jax.numpy as jnp
from jax.experimental import pallas as pl
from jax.experimental.pallas import tpu as pltpu

# ----------------------------- model dims -----------------------------------
B = 2            # batch
S = 8            # sequence length
H = 32           # hidden size
NH = 4           # attention heads
DH = H // NH     # head dim
F = 64           # FFN intermediate size
V = 128          # synthetic vocab size
L = 6            # len(config['id2label'])
NUM_LAYERS = 2
LN_EPS = 1e-7    # DeBERTa layer_norm_eps
BF16 = jnp.bfloat16
F32 = jnp.float32


# --------------------- fused forward kernel (single call) -------------------
def fused_forward_kernel(ids_ref, mask_ref, wemb_ref, pos_ref, embg_ref, embb_ref,
                         wqkv_ref, bqkv_ref, wo_ref, bo_ref, ln1g_ref, ln1b_ref,
                         w1_ref, b1_ref, w2_ref, b2_ref, ln2g_ref, ln2b_ref,
                         fcw_ref, fcb_ref, out_ref):
    def mxu(a, w_bf16):
        # activations cast to bf16; weights arrive pre-cast; f32 accumulate.
        return jnp.dot(a.astype(BF16), w_bf16, preferred_element_type=F32)

    def layernorm(v, g, b):
        mu = jnp.mean(v, axis=-1, keepdims=True)
        var = jnp.mean((v - mu) ** 2, axis=-1, keepdims=True)
        return (v - mu) * jax.lax.rsqrt(var + LN_EPS) * g + b

    # ---- embedding lookup fused in: exact one-hot row-select matmul ---------
    onehot = (jax.lax.broadcasted_iota(jnp.int32, (B * S, V), 1)
              == ids_ref[...]).astype(F32)                         # (B*S, V)
    x = jnp.dot(onehot, wemb_ref[...], preferred_element_type=F32)  # (B*S, H)
    x = layernorm(x + pos_ref[...], embg_ref[...], embb_ref[...])   # f32

    # ---- additive attention-mask bias, computed once in-kernel --------------
    negb = (1.0 - mask_ref[...].astype(F32)).reshape(B, 1, S) * (-1e9)   # (B,1,S)

    # ---- encoder layers (static unroll, weights indexed on layer axis) ------
    # TODO(synk): DeBERTa's disentangled relative-position attention bias is
    # not reproduced; standard scaled-dot-product attention is used.
    for li in range(NUM_LAYERS):
        # fused QKV projection: ONE MXU push per layer (scale folded into wq)
        qkv = mxu(x, wqkv_ref[li]) + bqkv_ref[li]                  # (B*S, 3H) f32
        qkv_b = qkv.astype(BF16)                                   # single cast

        # attention batched over B; static head loop with lane-column slices
        ctx_cols = []
        for n in range(NH):
            qn = qkv_b[:, n * DH:(n + 1) * DH].reshape(B, S, DH)
            kn = qkv_b[:, H + n * DH:H + (n + 1) * DH].reshape(B, S, DH)
            vn = qkv_b[:, 2 * H + n * DH:2 * H + (n + 1) * DH].reshape(B, S, DH)
            s_n = jnp.einsum('bqd,bkd->bqk', qn, kn,
                             preferred_element_type=F32)           # (B,S,S)
            s_n = s_n + negb
            m = jnp.max(s_n, axis=-1, keepdims=True)
            e = jnp.exp(s_n - m)
            p = e * pl.reciprocal(jnp.sum(e, axis=-1, keepdims=True), approx=True)
            ctx_n = jnp.einsum('bqk,bkd->bqd', p.astype(BF16), vn,
                               preferred_element_type=F32)         # (B,S,DH)
            ctx_cols.append(ctx_n.reshape(B * S, DH))
        ctx = jnp.concatenate(ctx_cols, axis=-1)                   # (B*S, H)

        # single un-split (H,H) output projection, bias added once
        attn = mxu(ctx, wo_ref[li]) + bo_ref[li]
        x = layernorm(x + attn, ln1g_ref[li], ln1b_ref[li])

        # ---- feed-forward (flat over B*S) -----------------------------------
        # TODO(synk): tanh-approx GELU; torch/DeBERTa default is exact erf GELU.
        h1 = jax.nn.gelu(mxu(x, w1_ref[li]) + b1_ref[li], approximate=True)
        h2 = mxu(h1, w2_ref[li]) + b2_ref[li]
        x = layernorm(x + h2, ln2g_ref[li], ln2b_ref[li])

    # ---- fc head on both CLS rows at once (dropout = identity) --------------
    cls = jnp.concatenate([x[b * S:b * S + 1, :] for b in range(B)], axis=0)  # (B,H)
    logits = mxu(cls, fcw_ref[...]) + fcb_ref[...]                 # (B, L)
    m = jnp.max(logits, axis=-1, keepdims=True)
    e = jnp.exp(logits - m)
    out_ref[...] = e / jnp.sum(e, axis=-1, keepdims=True)          # exact softmax


def fused_forward(ids_col, attention_mask, p):
    """ids_col: (B*S, 1) int32, attention_mask: (B, S) int32 {0,1}."""
    def full(shape):
        nd = len(shape)
        return pl.BlockSpec(shape, lambda i, nd=nd: (0,) * nd)

    in_specs = [
        full((B * S, 1)),                                      # input ids
        full((B, S)),                                          # attention mask
        full((V, H)), full((B * S, H)),                        # word_emb, pos (pre-tiled)
        full((1, H)), full((1, H)),                            # emb LN gamma/beta
        full((NUM_LAYERS, H, 3 * H)), full((NUM_LAYERS, 1, 3 * H)),  # wqkv, bqkv
        full((NUM_LAYERS, H, H)), full((NUM_LAYERS, 1, H)),    # wo, bo
        full((NUM_LAYERS, 1, H)), full((NUM_LAYERS, 1, H)),    # ln1 gamma/beta
        full((NUM_LAYERS, H, F)), full((NUM_LAYERS, 1, F)),    # w1, b1
        full((NUM_LAYERS, F, H)), full((NUM_LAYERS, 1, H)),    # w2, b2
        full((NUM_LAYERS, 1, H)), full((NUM_LAYERS, 1, H)),    # ln2 gamma/beta
        full((H, L)), full((1, L)),                            # fc_w, fc_b
    ]
    return pl.pallas_call(
        fused_forward_kernel,
        out_shape=jax.ShapeDtypeStruct((B, L), jnp.float32),
        grid_spec=pltpu.PrefetchScalarGridSpec(
            num_scalar_prefetch=0,
            grid=(1,),                       # single grid step: whole model
            in_specs=in_specs,
            out_specs=pl.BlockSpec((B, L), lambda i: (0, 0)),
        ),
        compiler_params=pltpu.CompilerParams(
            dimension_semantics=("arbitrary",)),
    )(ids_col, attention_mask,
      p["word_emb"], p["pos_flat"], p["emb_ln_g"], p["emb_ln_b"],
      p["wqkv"], p["bqkv"], p["wo"], p["bo"], p["ln1_g"], p["ln1_b"],
      p["w1"], p["b1"], p["w2"], p["b2"], p["ln2_g"], p["ln2_b"],
      p["fc_w"], p["fc_b"])


# ----------------------------- parameter init --------------------------------
def init_params(key):
    def normal(k, shape, scale=0.02):
        return jax.random.normal(k, shape, dtype=jnp.float32) * scale

    keys = jax.random.split(key, 9)
    # Attention 1/sqrt(DH) scale folded into wq (one-time, host-side). If bq
    # were nonzero it would need the same scaling (it is zeros here).
    att_scale = 1.0 / (DH ** 0.5)
    wq = normal(keys[3], (NUM_LAYERS, H, H)) * att_scale
    wk = normal(keys[4], (NUM_LAYERS, H, H))
    wv = normal(keys[5], (NUM_LAYERS, H, H))
    wqkv = jnp.concatenate([wq, wk, wv], axis=-1).astype(BF16)    # (NL, H, 3H) bf16

    return {
        "word_emb": normal(keys[0], (V, H)),                      # f32 (exact select)
        "pos_flat": jnp.tile(normal(keys[1], (S, H)), (B, 1)),    # (B*S, H) pre-tiled
        "emb_ln_g": jnp.ones((1, H), jnp.float32),
        "emb_ln_b": jnp.zeros((1, H), jnp.float32),
        # layer-stacked encoder weights; matmul weights pre-cast to bf16
        "wqkv": wqkv,
        "bqkv": jnp.zeros((NUM_LAYERS, 1, 3 * H), jnp.float32),
        "wo": normal(keys[6], (NUM_LAYERS, H, H)).astype(BF16),
        "bo": jnp.zeros((NUM_LAYERS, 1, H), jnp.float32),
        "ln1_g": jnp.ones((NUM_LAYERS, 1, H), jnp.float32),
        "ln1_b": jnp.zeros((NUM_LAYERS, 1, H), jnp.float32),
        "w1": normal(keys[7], (NUM_LAYERS, H, F)).astype(BF16),
        "b1": jnp.zeros((NUM_LAYERS, 1, F), jnp.float32),
        "w2": normal(keys[8], (NUM_LAYERS, F, H)).astype(BF16),
        "b2": jnp.zeros((NUM_LAYERS, 1, H), jnp.float32),
        "ln2_g": jnp.ones((NUM_LAYERS, 1, H), jnp.float32),
        "ln2_b": jnp.zeros((NUM_LAYERS, 1, H), jnp.float32),
        "fc_w": normal(keys[2], (H, L)).astype(BF16),             # Linear(H, L).weight.T
        "fc_b": jnp.zeros((1, L), jnp.float32),
    }


# ------------------------------- full forward --------------------------------
@jax.jit
def custom_model_forward(params, input_ids, attention_mask):
    """input_ids: (B, S) int32, attention_mask: (B, S) {0,1} int32."""
    # Everything (embedding gather, mask bias, 2 encoder layers, fc/softmax
    # head) runs inside ONE Pallas kernel; only this tiny reshape stays outside.
    ids_col = input_ids.reshape(B * S, 1)
    return fused_forward(ids_col, attention_mask, params)          # (B, L)


# ----------------------------------- main ------------------------------------
if __name__ == "__main__":
    key = jax.random.PRNGKey(0)
    k_param, k_ids = jax.random.split(key)

    params = init_params(k_param)
    input_ids = jax.random.randint(k_ids, (B, S), 0, V, dtype=jnp.int32)
    attention_mask = jnp.ones((B, S), dtype=jnp.int32).at[1, 6:].set(0)  # pad tail of row 1

    probs = custom_model_forward(params, input_ids, attention_mask)
    probs = jax.block_until_ready(probs)

    assert probs.shape == (B, L)
    assert bool(jnp.all(jnp.isfinite(probs)))
    assert bool(jnp.allclose(jnp.sum(probs, axis=1), 1.0, atol=1e-5))
    print("KERNEL_OK")
</pallas_src>

<mosaic_0001>
module attributes {stable_mosaic.version = 11 : i64} {
  func.func @fused_forward_kernel(%arg0: i32, %arg1: memref<16x1xi32, #tpu.memory_space<vmem>>, %arg2: memref<2x8xi32, #tpu.memory_space<vmem>>, %arg3: memref<128x32xf32, #tpu.memory_space<vmem>>, %arg4: memref<16x32xf32, #tpu.memory_space<vmem>>, %arg5: memref<1x32xf32, #tpu.memory_space<vmem>>, %arg6: memref<1x32xf32, #tpu.memory_space<vmem>>, %arg7: memref<2x32x96xbf16, #tpu.memory_space<vmem>>, %arg8: memref<2x1x96xf32, #tpu.memory_space<vmem>>, %arg9: memref<2x32x32xbf16, #tpu.memory_space<vmem>>, %arg10: memref<2x1x32xf32, #tpu.memory_space<vmem>>, %arg11: memref<2x1x32xf32, #tpu.memory_space<vmem>>, %arg12: memref<2x1x32xf32, #tpu.memory_space<vmem>>, %arg13: memref<2x32x64xbf16, #tpu.memory_space<vmem>>, %arg14: memref<2x1x64xf32, #tpu.memory_space<vmem>>, %arg15: memref<2x64x32xbf16, #tpu.memory_space<vmem>>, %arg16: memref<2x1x32xf32, #tpu.memory_space<vmem>>, %arg17: memref<2x1x32xf32, #tpu.memory_space<vmem>>, %arg18: memref<2x1x32xf32, #tpu.memory_space<vmem>>, %arg19: memref<32x6xbf16, #tpu.memory_space<vmem>>, %arg20: memref<1x6xf32, #tpu.memory_space<vmem>>, %arg21: memref<2x6xf32, #tpu.memory_space<vmem>>) attributes {dimension_semantics = [#tpu.dimension_semantics<arbitrary>], iteration_bounds = array<i64: 1>, scalar_prefetch = 0 : i64, scratch_operands = 0 : i64, tpu.core_type = #tpu.core_type<tc>, window_params = [{pipeline_mode = #tpu.pipeline_mode<synchronous>, transform_indices = @transform_0, window_bounds = array<i64: 16, 1>}, {pipeline_mode = #tpu.pipeline_mode<synchronous>, transform_indices = @transform_1, window_bounds = array<i64: 2, 8>}, {pipeline_mode = #tpu.pipeline_mode<synchronous>, transform_indices = @transform_2, window_bounds = array<i64: 128, 32>}, {pipeline_mode = #tpu.pipeline_mode<synchronous>, transform_indices = @transform_3, window_bounds = array<i64: 16, 32>}, {pipeline_mode = #tpu.pipeline_mode<synchronous>, transform_indices = @transform_4, window_bounds = array<i64: 1, 32>}, {pipeline_mode = #tpu.pipeline_mode<synchronous>, transform_indices = @transform_5, window_bounds = array<i64: 1, 32>}, {pipeline_mode = #tpu.pipeline_mode<synchronous>, transform_indices = @transform_6, window_bounds = array<i64: 2, 32, 96>}, {pipeline_mode = #tpu.pipeline_mode<synchronous>, transform_indices = @transform_7, window_bounds = array<i64: 2, 1, 96>}, {pipeline_mode = #tpu.pipeline_mode<synchronous>, transform_indices = @transform_8, window_bounds = array<i64: 2, 32, 32>}, {pipeline_mode = #tpu.pipeline_mode<synchronous>, transform_indices = @transform_9, window_bounds = array<i64: 2, 1, 32>}, {pipeline_mode = #tpu.pipeline_mode<synchronous>, transform_indices = @transform_10, window_bounds = array<i64: 2, 1, 32>}, {pipeline_mode = #tpu.pipeline_mode<synchronous>, transform_indices = @transform_11, window_bounds = array<i64: 2, 1, 32>}, {pipeline_mode = #tpu.pipeline_mode<synchronous>, transform_indices = @transform_12, window_bounds = array<i64: 2, 32, 64>}, {pipeline_mode = #tpu.pipeline_mode<synchronous>, transform_indices = @transform_13, window_bounds = array<i64: 2, 1, 64>}, {pipeline_mode = #tpu.pipeline_mode<synchronous>, transform_indices = @transform_14, window_bounds = array<i64: 2, 64, 32>}, {pipeline_mode = #tpu.pipeline_mode<synchronous>, transform_indices = @transform_15, window_bounds = array<i64: 2, 1, 32>}, {pipeline_mode = #tpu.pipeline_mode<synchronous>, transform_indices = @transform_16, window_bounds = array<i64: 2, 1, 32>}, {pipeline_mode = #tpu.pipeline_mode<synchronous>, transform_indices = @transform_17, window_bounds = array<i64: 2, 1, 32>}, {pipeline_mode = #tpu.pipeline_mode<synchronous>, transform_indices = @transform_18, window_bounds = array<i64: 32, 6>}, {pipeline_mode = #tpu.pipeline_mode<synchronous>, transform_indices = @transform_19, window_bounds = array<i64: 1, 6>}, {pipeline_mode = #tpu.pipeline_mode<synchronous>, transform_indices = @transform_20, window_bounds = array<i64: 2, 6>}]} {
    %0 = tpu.iota {dimensions = array<i32: 1>} : vector<16x128xi32>
    %c0 = arith.constant 0 : index
    %c0_0 = arith.constant 0 : index
    %1 = vector.load %arg1[%c0, %c0_0] : memref<16x1xi32, #tpu.memory_space<vmem>>, vector<16x1xi32>
    %2 = vector.broadcast %1 : vector<16x1xi32> to vector<16x128xi32>
    %3 = arith.cmpi eq, %0, %2 : vector<16x128xi32>
    %4 = arith.extui %3 : vector<16x128xi1> to vector<16x128xi32>
    %5 = arith.sitofp %4 : vector<16x128xi32> to vector<16x128xf32>
    %c0_1 = arith.constant 0 : index
    %c0_2 = arith.constant 0 : index
    %6 = vector.load %arg3[%c0_1, %c0_2] : memref<128x32xf32, #tpu.memory_space<vmem>>, vector<128x32xf32>
    %cst = arith.constant dense<0.000000e+00> : vector<16x32xf32>
    %7 = tpu.matmul %5, %6, %cst {dimension_numbers = #tpu.dot_dimension_numbers<[1], [0], [0], [1], [0, 0, 1, 1], [], []>} : vector<16x128xf32>, vector<128x32xf32>, vector<16x32xf32> -> vector<16x32xf32>
    %c0_3 = arith.constant 0 : index
    %c0_4 = arith.constant 0 : index
    %8 = vector.load %arg4[%c0_3, %c0_4] : memref<16x32xf32, #tpu.memory_space<vmem>>, vector<16x32xf32>
    %9 = arith.addf %7, %8 : vector<16x32xf32>
    %c0_5 = arith.constant 0 : index
    %c0_6 = arith.constant 0 : index
    %10 = vector.load %arg5[%c0_5, %c0_6] : memref<1x32xf32, #tpu.memory_space<vmem>>, vector<1x32xf32>
    %c0_7 = arith.constant 0 : index
    %c0_8 = arith.constant 0 : index
    %11 = vector.load %arg6[%c0_7, %c0_8] : memref<1x32xf32, #tpu.memory_space<vmem>>, vector<1x32xf32>
    %cst_9 = arith.constant dense<0.000000e+00> : vector<16xf32>
    %12 = vector.multi_reduction <add>, %9, %cst_9 [1] : vector<16x32xf32> to vector<16xf32>
    %13 = vector.shape_cast %12 : vector<16xf32> to vector<16x1xf32>
    %cst_10 = arith.constant 3.200000e+01 : f32
    %14 = vector.broadcast %cst_10 : f32 to vector<16x1xf32>
    %15 = arith.divf %13, %14 : vector<16x1xf32>
    %16 = vector.broadcast %15 : vector<16x1xf32> to vector<16x32xf32>
    %17 = arith.subf %9, %16 : vector<16x32xf32>
    %18 = arith.mulf %17, %17 : vector<16x32xf32>
    %cst_11 = arith.constant dense<0.000000e+00> : vector<16xf32>
    %19 = vector.multi_reduction <add>, %18, %cst_11 [1] : vector<16x32xf32> to vector<16xf32>
    %20 = vector.shape_cast %19 : vector<16xf32> to vector<16x1xf32>
    %cst_12 = arith.constant 3.200000e+01 : f32
    %21 = vector.broadcast %cst_12 : f32 to vector<16x1xf32>
    %22 = arith.divf %20, %21 : vector<16x1xf32>
    %23 = vector.broadcast %15 : vector<16x1xf32> to vector<16x32xf32>
    %24 = arith.subf %9, %23 : vector<16x32xf32>
    %cst_13 = arith.constant 1.000000e-07 : f32
    %25 = vector.broadcast %cst_13 : f32 to vector<16x1xf32>
    %26 = arith.addf %22, %25 : vector<16x1xf32>
    %27 = math.rsqrt %26 : vector<16x1xf32>
    %28 = vector.broadcast %27 : vector<16x1xf32> to vector<16x32xf32>
    %29 = arith.mulf %24, %28 : vector<16x32xf32>
    %30 = vector.broadcast %10 : vector<1x32xf32> to vector<16x32xf32>
    %31 = arith.mulf %29, %30 : vector<16x32xf32>
    %32 = vector.broadcast %11 : vector<1x32xf32> to vector<16x32xf32>
    %33 = arith.addf %31, %32 : vector<16x32xf32>
    %c0_14 = arith.constant 0 : index
    %c0_15 = arith.constant 0 : index
    %34 = vector.load %arg2[%c0_14, %c0_15] : memref<2x8xi32, #tpu.memory_space<vmem>>, vector<2x8xi32>
    %35 = arith.sitofp %34 : vector<2x8xi32> to vector<2x8xf32>
    %cst_16 = arith.constant 1.000000e+00 : f32
    %36 = vector.broadcast %cst_16 : f32 to vector<2x8xf32>
    %37 = arith.subf %36, %35 : vector<2x8xf32>
    %38 = vector.shape_cast %37 : vector<2x8xf32> to vector<2x1x8xf32>
    %cst_17 = arith.constant -1.000000e+09 : f32
    %39 = vector.broadcast %cst_17 : f32 to vector<2x1x8xf32>
    %40 = arith.mulf %38, %39 : vector<2x1x8xf32>
    %c0_18 = arith.constant 0 : index
    %c0_19 = arith.constant 0 : index
    %c0_20 = arith.constant 0 : index
    %41 = vector.load %arg7[%c0_18, %c0_19, %c0_20] : memref<2x32x96xbf16, #tpu.memory_space<vmem>>, vector<1x32x96xbf16>
    %42 = vector.shape_cast %41 : vector<1x32x96xbf16> to vector<32x96xbf16>
    %43 = arith.truncf %33 : vector<16x32xf32> to vector<16x32xbf16>
    %cst_21 = arith.constant dense<0.000000e+00> : vector<16x96xf32>
    %44 = tpu.matmul %43, %42, %cst_21 {dimension_numbers = #tpu.dot_dimension_numbers<[1], [0], [0], [1], [0, 0, 1, 1], [], []>} : vector<16x32xbf16>, vector<32x96xbf16>, vector<16x96xf32> -> vector<16x96xf32>
    %c0_22 = arith.constant 0 : index
    %c0_23 = arith.constant 0 : index
    %c0_24 = arith.constant 0 : index
    %45 = vector.load %arg8[%c0_22, %c0_23, %c0_24] : memref<2x1x96xf32, #tpu.memory_space<vmem>>, vector<1x1x96xf32>
    %46 = vector.shape_cast %45 : vector<1x1x96xf32> to vector<1x96xf32>
    %47 = vector.broadcast %46 : vector<1x96xf32> to vector<16x96xf32>
    %48 = arith.addf %44, %47 : vector<16x96xf32>
    %49 = arith.truncf %48 : vector<16x96xf32> to vector<16x96xbf16>
    %50 = vector.extract_strided_slice %49 {offsets = [0, 0], sizes = [16, 8], strides = [1, 1]} : vector<16x96xbf16> to vector<16x8xbf16>
    %51 = vector.shape_cast %50 : vector<16x8xbf16> to vector<2x8x8xbf16>
    %52 = vector.extract_strided_slice %49 {offsets = [0, 32], sizes = [16, 8], strides = [1, 1]} : vector<16x96xbf16> to vector<16x8xbf16>
    %53 = vector.shape_cast %52 : vector<16x8xbf16> to vector<2x8x8xbf16>
    %54 = vector.extract_strided_slice %49 {offsets = [0, 64], sizes = [16, 8], strides = [1, 1]} : vector<16x96xbf16> to vector<16x8xbf16>
    %55 = vector.shape_cast %54 : vector<16x8xbf16> to vector<2x8x8xbf16>
    "tpu.trace_start"() <{level = 10 : i32, message = "bqd,bkd->bqk"}> : () -> ()
    %cst_25 = arith.constant dense<0.000000e+00> : vector<2x8x8xf32>
    %56 = tpu.matmul %51, %53, %cst_25 {dimension_numbers = #tpu.dot_dimension_numbers<[2], [2], [1], [1], [0, 0, 0, 1, 1, 1], [0], [0]>} : vector<2x8x8xbf16>, vector<2x8x8xbf16>, vector<2x8x8xf32> -> vector<2x8x8xf32>
    "tpu.trace_stop"() : () -> ()
    %57 = vector.broadcast %40 : vector<2x1x8xf32> to vector<2x8x8xf32>
    %58 = arith.addf %56, %57 : vector<2x8x8xf32>
    %cst_26 = arith.constant dense<0xFF800000> : vector<2x8xf32>
    %59 = vector.multi_reduction <maximumf>, %58, %cst_26 [2] : vector<2x8x8xf32> to vector<2x8xf32>
    %60 = vector.shape_cast %59 : vector<2x8xf32> to vector<2x8x1xf32>
    %61 = vector.broadcast %60 : vector<2x8x1xf32> to vector<2x8x8xf32>
    %62 = arith.subf %58, %61 : vector<2x8x8xf32>
    %63 = math.exp %62 : vector<2x8x8xf32>
    %cst_27 = arith.constant dense<0.000000e+00> : vector<2x8xf32>
    %64 = vector.multi_reduction <add>, %63, %cst_27 [2] : vector<2x8x8xf32> to vector<2x8xf32>
    %65 = vector.shape_cast %64 : vector<2x8xf32> to vector<2x8x1xf32>
    %66 = tpu.reciprocal %65 {approx = true} : vector<2x8x1xf32> -> vector<2x8x1xf32>
    %67 = vector.broadcast %66 : vector<2x8x1xf32> to vector<2x8x8xf32>
    %68 = arith.mulf %63, %67 : vector<2x8x8xf32>
    %69 = arith.truncf %68 : vector<2x8x8xf32> to vector<2x8x8xbf16>
    "tpu.trace_start"() <{level = 10 : i32, message = "bqk,bkd->bqd"}> : () -> ()
    %cst_28 = arith.constant dense<0.000000e+00> : vector<2x8x8xf32>
    %70 = tpu.matmul %69, %55, %cst_28 {dimension_numbers = #tpu.dot_dimension_numbers<[2], [1], [1], [2], [0, 0, 0, 1, 1, 2], [0], [0]>} : vector<2x8x8xbf16>, vector<2x8x8xbf16>, vector<2x8x8xf32> -> vector<2x8x8xf32>
    "tpu.trace_stop"() : () -> ()
    %71 = vector.shape_cast %70 : vector<2x8x8xf32> to vector<16x8xf32>
    %72 = vector.extract_strided_slice %49 {offsets = [0, 8], sizes = [16, 8], strides = [1, 1]} : vector<16x96xbf16> to vector<16x8xbf16>
    %73 = vector.shape_cast %72 : vector<16x8xbf16> to vector<2x8x8xbf16>
    %74 = vector.extract_strided_slice %49 {offsets = [0, 40], sizes = [16, 8], strides = [1, 1]} : vector<16x96xbf16> to vector<16x8xbf16>
    %75 = vector.shape_cast %74 : vector<16x8xbf16> to vector<2x8x8xbf16>
    %76 = vector.extract_strided_slice %49 {offsets = [0, 72], sizes = [16, 8], strides = [1, 1]} : vector<16x96xbf16> to vector<16x8xbf16>
    %77 = vector.shape_cast %76 : vector<16x8xbf16> to vector<2x8x8xbf16>
    "tpu.trace_start"() <{level = 10 : i32, message = "bqd,bkd->bqk"}> : () -> ()
    %cst_29 = arith.constant dense<0.000000e+00> : vector<2x8x8xf32>
    %78 = tpu.matmul %73, %75, %cst_29 {dimension_numbers = #tpu.dot_dimension_numbers<[2], [2], [1], [1], [0, 0, 0, 1, 1, 1], [0], [0]>} : vector<2x8x8xbf16>, vector<2x8x8xbf16>, vector<2x8x8xf32> -> vector<2x8x8xf32>
    "tpu.trace_stop"() : () -> ()
    %79 = vector.broadcast %40 : vector<2x1x8xf32> to vector<2x8x8xf32>
    %80 = arith.addf %78, %79 : vector<2x8x8xf32>
    %cst_30 = arith.constant dense<0xFF800000> : vector<2x8xf32>
    %81 = vector.multi_reduction <maximumf>, %80, %cst_30 [2] : vector<2x8x8xf32> to vector<2x8xf32>
    %82 = vector.shape_cast %81 : vector<2x8xf32> to vector<2x8x1xf32>
    %83 = vector.broadcast %82 : vector<2x8x1xf32> to vector<2x8x8xf32>
    %84 = arith.subf %80, %83 : vector<2x8x8xf32>
    %85 = math.exp %84 : vector<2x8x8xf32>
    %cst_31 = arith.constant dense<0.000000e+00> : vector<2x8xf32>
    %86 = vector.multi_reduction <add>, %85, %cst_31 [2] : vector<2x8x8xf32> to vector<2x8xf32>
    %87 = vector.shape_cast %86 : vector<2x8xf32> to vector<2x8x1xf32>
    %88 = tpu.reciprocal %87 {approx = true} : vector<2x8x1xf32> -> vector<2x8x1xf32>
    %89 = vector.broadcast %88 : vector<2x8x1xf32> to vector<2x8x8xf32>
    %90 = arith.mulf %85, %89 : vector<2x8x8xf32>
    %91 = arith.truncf %90 : vector<2x8x8xf32> to vector<2x8x8xbf16>
    "tpu.trace_start"() <{level = 10 : i32, message = "bqk,bkd->bqd"}> : () -> ()
    %cst_32 = arith.constant dense<0.000000e+00> : vector<2x8x8xf32>
    %92 = tpu.matmul %91, %77, %cst_32 {dimension_numbers = #tpu.dot_dimension_numbers<[2], [1], [1], [2], [0, 0, 0, 1, 1, 2], [0], [0]>} : vector<2x8x8xbf16>, vector<2x8x8xbf16>, vector<2x8x8xf32> -> vector<2x8x8xf32>
    "tpu.trace_stop"() : () -> ()
    %93 = vector.shape_cast %92 : vector<2x8x8xf32> to vector<16x8xf32>
    %94 = vector.extract_strided_slice %49 {offsets = [0, 16], sizes = [16, 8], strides = [1, 1]} : vector<16x96xbf16> to vector<16x8xbf16>
    %95 = vector.shape_cast %94 : vector<16x8xbf16> to vector<2x8x8xbf16>
    %96 = vector.extract_strided_slice %49 {offsets = [0, 48], sizes = [16, 8], strides = [1, 1]} : vector<16x96xbf16> to vector<16x8xbf16>
    %97 = vector.shape_cast %96 : vector<16x8xbf16> to vector<2x8x8xbf16>
    %98 = vector.extract_strided_slice %49 {offsets = [0, 80], sizes = [16, 8], strides = [1, 1]} : vector<16x96xbf16> to vector<16x8xbf16>
    %99 = vector.shape_cast %98 : vector<16x8xbf16> to vector<2x8x8xbf16>
    "tpu.trace_start"() <{level = 10 : i32, message = "bqd,bkd->bqk"}> : () -> ()
    %cst_33 = arith.constant dense<0.000000e+00> : vector<2x8x8xf32>
    %100 = tpu.matmul %95, %97, %cst_33 {dimension_numbers = #tpu.dot_dimension_numbers<[2], [2], [1], [1], [0, 0, 0, 1, 1, 1], [0], [0]>} : vector<2x8x8xbf16>, vector<2x8x8xbf16>, vector<2x8x8xf32> -> vector<2x8x8xf32>
    "tpu.trace_stop"() : () -> ()
    %101 = vector.broadcast %40 : vector<2x1x8xf32> to vector<2x8x8xf32>
    %102 = arith.addf %100, %101 : vector<2x8x8xf32>
    %cst_34 = arith.constant dense<0xFF800000> : vector<2x8xf32>
    %103 = vector.multi_reduction <maximumf>, %102, %cst_34 [2] : vector<2x8x8xf32> to vector<2x8xf32>
    %104 = vector.shape_cast %103 : vector<2x8xf32> to vector<2x8x1xf32>
    %105 = vector.broadcast %104 : vector<2x8x1xf32> to vector<2x8x8xf32>
    %106 = arith.subf %102, %105 : vector<2x8x8xf32>
    %107 = math.exp %106 : vector<2x8x8xf32>
    %cst_35 = arith.constant dense<0.000000e+00> : vector<2x8xf32>
    %108 = vector.multi_reduction <add>, %107, %cst_35 [2] : vector<2x8x8xf32> to vector<2x8xf32>
    %109 = vector.shape_cast %108 : vector<2x8xf32> to vector<2x8x1xf32>
    %110 = tpu.reciprocal %109 {approx = true} : vector<2x8x1xf32> -> vector<2x8x1xf32>
    %111 = vector.broadcast %110 : vector<2x8x1xf32> to vector<2x8x8xf32>
    %112 = arith.mulf %107, %111 : vector<2x8x8xf32>
    %113 = arith.truncf %112 : vector<2x8x8xf32> to vector<2x8x8xbf16>
    "tpu.trace_start"() <{level = 10 : i32, message = "bqk,bkd->bqd"}> : () -> ()
    %cst_36 = arith.constant dense<0.000000e+00> : vector<2x8x8xf32>
    %114 = tpu.matmul %113, %99, %cst_36 {dimension_numbers = #tpu.dot_dimension_numbers<[2], [1], [1], [2], [0, 0, 0, 1, 1, 2], [0], [0]>} : vector<2x8x8xbf16>, vector<2x8x8xbf16>, vector<2x8x8xf32> -> vector<2x8x8xf32>
    "tpu.trace_stop"() : () -> ()
    %115 = vector.shape_cast %114 : vector<2x8x8xf32> to vector<16x8xf32>
    %116 = vector.extract_strided_slice %49 {offsets = [0, 24], sizes = [16, 8], strides = [1, 1]} : vector<16x96xbf16> to vector<16x8xbf16>
    %117 = vector.shape_cast %116 : vector<16x8xbf16> to vector<2x8x8xbf16>
    %118 = vector.extract_strided_slice %49 {offsets = [0, 56], sizes = [16, 8], strides = [1, 1]} : vector<16x96xbf16> to vector<16x8xbf16>
    %119 = vector.shape_cast %118 : vector<16x8xbf16> to vector<2x8x8xbf16>
    %120 = vector.extract_strided_slice %49 {offsets = [0, 88], sizes = [16, 8], strides = [1, 1]} : vector<16x96xbf16> to vector<16x8xbf16>
    %121 = vector.shape_cast %120 : vector<16x8xbf16> to vector<2x8x8xbf16>
    "tpu.trace_start"() <{level = 10 : i32, message = "bqd,bkd->bqk"}> : () -> ()
    %cst_37 = arith.constant dense<0.000000e+00> : vector<2x8x8xf32>
    %122 = tpu.matmul %117, %119, %cst_37 {dimension_numbers = #tpu.dot_dimension_numbers<[2], [2], [1], [1], [0, 0, 0, 1, 1, 1], [0], [0]>} : vector<2x8x8xbf16>, vector<2x8x8xbf16>, vector<2x8x8xf32> -> vector<2x8x8xf32>
    "tpu.trace_stop"() : () -> ()
    %123 = vector.broadcast %40 : vector<2x1x8xf32> to vector<2x8x8xf32>
    %124 = arith.addf %122, %123 : vector<2x8x8xf32>
    %cst_38 = arith.constant dense<0xFF800000> : vector<2x8xf32>
    %125 = vector.multi_reduction <maximumf>, %124, %cst_38 [2] : vector<2x8x8xf32> to vector<2x8xf32>
    %126 = vector.shape_cast %125 : vector<2x8xf32> to vector<2x8x1xf32>
    %127 = vector.broadcast %126 : vector<2x8x1xf32> to vector<2x8x8xf32>
    %128 = arith.subf %124, %127 : vector<2x8x8xf32>
    %129 = math.exp %128 : vector<2x8x8xf32>
    %cst_39 = arith.constant dense<0.000000e+00> : vector<2x8xf32>
    %130 = vector.multi_reduction <add>, %129, %cst_39 [2] : vector<2x8x8xf32> to vector<2x8xf32>
    %131 = vector.shape_cast %130 : vector<2x8xf32> to vector<2x8x1xf32>
    %132 = tpu.reciprocal %131 {approx = true} : vector<2x8x1xf32> -> vector<2x8x1xf32>
    %133 = vector.broadcast %132 : vector<2x8x1xf32> to vector<2x8x8xf32>
    %134 = arith.mulf %129, %133 : vector<2x8x8xf32>
    %135 = arith.truncf %134 : vector<2x8x8xf32> to vector<2x8x8xbf16>
    "tpu.trace_start"() <{level = 10 : i32, message = "bqk,bkd->bqd"}> : () -> ()
    %cst_40 = arith.constant dense<0.000000e+00> : vector<2x8x8xf32>
    %136 = tpu.matmul %135, %121, %cst_40 {dimension_numbers = #tpu.dot_dimension_numbers<[2], [1], [1], [2], [0, 0, 0, 1, 1, 2], [0], [0]>} : vector<2x8x8xbf16>, vector<2x8x8xbf16>, vector<2x8x8xf32> -> vector<2x8x8xf32>
    "tpu.trace_stop"() : () -> ()
    %137 = vector.shape_cast %136 : vector<2x8x8xf32> to vector<16x8xf32>
    %138 = tpu.concatenate %71, %93, %115, %137 in 1 : vector<16x8xf32>, vector<16x8xf32>, vector<16x8xf32>, vector<16x8xf32> -> vector<16x32xf32>
    %c0_41 = arith.constant 0 : index
    %c0_42 = arith.constant 0 : index
    %c0_43 = arith.constant 0 : index
    %139 = vector.load %arg9[%c0_41, %c0_42, %c0_43] : memref<2x32x32xbf16, #tpu.memory_space<vmem>>, vector<1x32x32xbf16>
    %140 = vector.shape_cast %139 : vector<1x32x32xbf16> to vector<32x32xbf16>
    %141 = arith.truncf %138 : vector<16x32xf32> to vector<16x32xbf16>
    %cst_44 = arith.constant dense<0.000000e+00> : vector<16x32xf32>
    %142 = tpu.matmul %141, %140, %cst_44 {dimension_numbers = #tpu.dot_dimension_numbers<[1], [0], [0], [1], [0, 0, 1, 1], [], []>} : vector<16x32xbf16>, vector<32x32xbf16>, vector<16x32xf32> -> vector<16x32xf32>
    %c0_45 = arith.constant 0 : index
    %c0_46 = arith.constant 0 : index
    %c0_47 = arith.constant 0 : index
    %143 = vector.load %arg10[%c0_45, %c0_46, %c0_47] : memref<2x1x32xf32, #tpu.memory_space<vmem>>, vector<1x1x32xf32>
    %144 = vector.shape_cast %143 : vector<1x1x32xf32> to vector<1x32xf32>
    %145 = vector.broadcast %144 : vector<1x32xf32> to vector<16x32xf32>
    %146 = arith.addf %142, %145 : vector<16x32xf32>
    %147 = arith.addf %33, %146 : vector<16x32xf32>
    %c0_48 = arith.constant 0 : index
    %c0_49 = arith.constant 0 : index
    %c0_50 = arith.constant 0 : index
    %148 = vector.load %arg11[%c0_48, %c0_49, %c0_50] : memref<2x1x32xf32, #tpu.memory_space<vmem>>, vector<1x1x32xf32>
    %149 = vector.shape_cast %148 : vector<1x1x32xf32> to vector<1x32xf32>
    %c0_51 = arith.constant 0 : index
    %c0_52 = arith.constant 0 : index
    %c0_53 = arith.constant 0 : index
    %150 = vector.load %arg12[%c0_51, %c0_52, %c0_53] : memref<2x1x32xf32, #tpu.memory_space<vmem>>, vector<1x1x32xf32>
    %151 = vector.shape_cast %150 : vector<1x1x32xf32> to vector<1x32xf32>
    %cst_54 = arith.constant dense<0.000000e+00> : vector<16xf32>
    %152 = vector.multi_reduction <add>, %147, %cst_54 [1] : vector<16x32xf32> to vector<16xf32>
    %153 = vector.shape_cast %152 : vector<16xf32> to vector<16x1xf32>
    %cst_55 = arith.constant 3.200000e+01 : f32
    %154 = vector.broadcast %cst_55 : f32 to vector<16x1xf32>
    %155 = arith.divf %153, %154 : vector<16x1xf32>
    %156 = vector.broadcast %155 : vector<16x1xf32> to vector<16x32xf32>
    %157 = arith.subf %147, %156 : vector<16x32xf32>
    %158 = arith.mulf %157, %157 : vector<16x32xf32>
    %cst_56 = arith.constant dense<0.000000e+00> : vector<16xf32>
    %159 = vector.multi_reduction <add>, %158, %cst_56 [1] : vector<16x32xf32> to vector<16xf32>
    %160 = vector.shape_cast %159 : vector<16xf32> to vector<16x1xf32>
    %cst_57 = arith.constant 3.200000e+01 : f32
    %161 = vector.broadcast %cst_57 : f32 to vector<16x1xf32>
    %162 = arith.divf %160, %161 : vector<16x1xf32>
    %163 = vector.broadcast %155 : vector<16x1xf32> to vector<16x32xf32>
    %164 = arith.subf %147, %163 : vector<16x32xf32>
    %cst_58 = arith.constant 1.000000e-07 : f32
    %165 = vector.broadcast %cst_58 : f32 to vector<16x1xf32>
    %166 = arith.addf %162, %165 : vector<16x1xf32>
    %167 = math.rsqrt %166 : vector<16x1xf32>
    %168 = vector.broadcast %167 : vector<16x1xf32> to vector<16x32xf32>
    %169 = arith.mulf %164, %168 : vector<16x32xf32>
    %170 = vector.broadcast %149 : vector<1x32xf32> to vector<16x32xf32>
    %171 = arith.mulf %169, %170 : vector<16x32xf32>
    %172 = vector.broadcast %151 : vector<1x32xf32> to vector<16x32xf32>
    %173 = arith.addf %171, %172 : vector<16x32xf32>
    %c0_59 = arith.constant 0 : index
    %c0_60 = arith.constant 0 : index
    %c0_61 = arith.constant 0 : index
    %174 = vector.load %arg13[%c0_59, %c0_60, %c0_61] : memref<2x32x64xbf16, #tpu.memory_space<vmem>>, vector<1x32x64xbf16>
    %175 = vector.shape_cast %174 : vector<1x32x64xbf16> to vector<32x64xbf16>
    %176 = arith.truncf %173 : vector<16x32xf32> to vector<16x32xbf16>
    %cst_62 = arith.constant dense<0.000000e+00> : vector<16x64xf32>
    %177 = tpu.matmul %176, %175, %cst_62 {dimension_numbers = #tpu.dot_dimension_numbers<[1], [0], [0], [1], [0, 0, 1, 1], [], []>} : vector<16x32xbf16>, vector<32x64xbf16>, vector<16x64xf32> -> vector<16x64xf32>
    %c0_63 = arith.constant 0 : index
    %c0_64 = arith.constant 0 : index
    %c0_65 = arith.constant 0 : index
    %178 = vector.load %arg14[%c0_63, %c0_64, %c0_65] : memref<2x1x64xf32, #tpu.memory_space<vmem>>, vector<1x1x64xf32>
    %179 = vector.shape_cast %178 : vector<1x1x64xf32> to vector<1x64xf32>
    %180 = vector.broadcast %179 : vector<1x64xf32> to vector<16x64xf32>
    %181 = arith.addf %177, %180 : vector<16x64xf32>
    %182 = arith.mulf %181, %181 : vector<16x64xf32>
    %183 = arith.mulf %181, %182 : vector<16x64xf32>
    %cst_66 = arith.constant 4.471500e-02 : f32
    %184 = vector.broadcast %cst_66 : f32 to vector<16x64xf32>
    %185 = arith.mulf %184, %183 : vector<16x64xf32>
    %186 = arith.addf %181, %185 : vector<16x64xf32>
    %cst_67 = arith.constant 0.797884583 : f32
    %187 = vector.broadcast %cst_67 : f32 to vector<16x64xf32>
    %188 = arith.mulf %187, %186 : vector<16x64xf32>
    %189 = math.tanh %188 : vector<16x64xf32>
    %cst_68 = arith.constant 1.000000e+00 : f32
    %190 = vector.broadcast %cst_68 : f32 to vector<16x64xf32>
    %191 = arith.addf %190, %189 : vector<16x64xf32>
    %cst_69 = arith.constant 5.000000e-01 : f32
    %192 = vector.broadcast %cst_69 : f32 to vector<16x64xf32>
    %193 = arith.mulf %192, %191 : vector<16x64xf32>
    %194 = arith.mulf %181, %193 : vector<16x64xf32>
    %c0_70 = arith.constant 0 : index
    %c0_71 = arith.constant 0 : index
    %c0_72 = arith.constant 0 : index
    %195 = vector.load %arg15[%c0_70, %c0_71, %c0_72] : memref<2x64x32xbf16, #tpu.memory_space<vmem>>, vector<1x64x32xbf16>
    %196 = vector.shape_cast %195 : vector<1x64x32xbf16> to vector<64x32xbf16>
    %197 = arith.truncf %194 : vector<16x64xf32> to vector<16x64xbf16>
    %cst_73 = arith.constant dense<0.000000e+00> : vector<16x32xf32>
    %198 = tpu.matmul %197, %196, %cst_73 {dimension_numbers = #tpu.dot_dimension_numbers<[1], [0], [0], [1], [0, 0, 1, 1], [], []>} : vector<16x64xbf16>, vector<64x32xbf16>, vector<16x32xf32> -> vector<16x32xf32>
    %c0_74 = arith.constant 0 : index
    %c0_75 = arith.constant 0 : index
    %c0_76 = arith.constant 0 : index
    %199 = vector.load %arg16[%c0_74, %c0_75, %c0_76] : memref<2x1x32xf32, #tpu.memory_space<vmem>>, vector<1x1x32xf32>
    %200 = vector.shape_cast %199 : vector<1x1x32xf32> to vector<1x32xf32>
    %201 = vector.broadcast %200 : vector<1x32xf32> to vector<16x32xf32>
    %202 = arith.addf %198, %201 : vector<16x32xf32>
    %203 = arith.addf %173, %202 : vector<16x32xf32>
    %c0_77 = arith.constant 0 : index
    %c0_78 = arith.constant 0 : index
    %c0_79 = arith.constant 0 : index
    %204 = vector.load %arg17[%c0_77, %c0_78, %c0_79] : memref<2x1x32xf32, #tpu.memory_space<vmem>>, vector<1x1x32xf32>
    %205 = vector.shape_cast %204 : vector<1x1x32xf32> to vector<1x32xf32>
    %c0_80 = arith.constant 0 : index
    %c0_81 = arith.constant 0 : index
    %c0_82 = arith.constant 0 : index
    %206 = vector.load %arg18[%c0_80, %c0_81, %c0_82] : memref<2x1x32xf32, #tpu.memory_space<vmem>>, vector<1x1x32xf32>
    %207 = vector.shape_cast %206 : vector<1x1x32xf32> to vector<1x32xf32>
    %cst_83 = arith.constant dense<0.000000e+00> : vector<16xf32>
    %208 = vector.multi_reduction <add>, %203, %cst_83 [1] : vector<16x32xf32> to vector<16xf32>
    %209 = vector.shape_cast %208 : vector<16xf32> to vector<16x1xf32>
    %cst_84 = arith.constant 3.200000e+01 : f32
    %210 = vector.broadcast %cst_84 : f32 to vector<16x1xf32>
    %211 = arith.divf %209, %210 : vector<16x1xf32>
    %212 = vector.broadcast %211 : vector<16x1xf32> to vector<16x32xf32>
    %213 = arith.subf %203, %212 : vector<16x32xf32>
    %214 = arith.mulf %213, %213 : vector<16x32xf32>
    %cst_85 = arith.constant dense<0.000000e+00> : vector<16xf32>
    %215 = vector.multi_reduction <add>, %214, %cst_85 [1] : vector<16x32xf32> to vector<16xf32>
    %216 = vector.shape_cast %215 : vector<16xf32> to vector<16x1xf32>
    %cst_86 = arith.constant 3.200000e+01 : f32
    %217 = vector.broadcast %cst_86 : f32 to vector<16x1xf32>
    %218 = arith.divf %216, %217 : vector<16x1xf32>
    %219 = vector.broadcast %211 : vector<16x1xf32> to vector<16x32xf32>
    %220 = arith.subf %203, %219 : vector<16x32xf32>
    %cst_87 = arith.constant 1.000000e-07 : f32
    %221 = vector.broadcast %cst_87 : f32 to vector<16x1xf32>
    %222 = arith.addf %218, %221 : vector<16x1xf32>
    %223 = math.rsqrt %222 : vector<16x1xf32>
    %224 = vector.broadcast %223 : vector<16x1xf32> to vector<16x32xf32>
    %225 = arith.mulf %220, %224 : vector<16x32xf32>
    %226 = vector.broadcast %205 : vector<1x32xf32> to vector<16x32xf32>
    %227 = arith.mulf %225, %226 : vector<16x32xf32>
    %228 = vector.broadcast %207 : vector<1x32xf32> to vector<16x32xf32>
    %229 = arith.addf %227, %228 : vector<16x32xf32>
    %c1 = arith.constant 1 : index
    %c0_88 = arith.constant 0 : index
    %c0_89 = arith.constant 0 : index
    %230 = vector.load %arg7[%c1, %c0_88, %c0_89] : memref<2x32x96xbf16, #tpu.memory_space<vmem>>, vector<1x32x96xbf16>
    %231 = vector.shape_cast %230 : vector<1x32x96xbf16> to vector<32x96xbf16>
    %232 = arith.truncf %229 : vector<16x32xf32> to vector<16x32xbf16>
    %cst_90 = arith.constant dense<0.000000e+00> : vector<16x96xf32>
    %233 = tpu.matmul %232, %231, %cst_90 {dimension_numbers = #tpu.dot_dimension_numbers<[1], [0], [0], [1], [0, 0, 1, 1], [], []>} : vector<16x32xbf16>, vector<32x96xbf16>, vector<16x96xf32> -> vector<16x96xf32>
    %c1_91 = arith.constant 1 : index
    %c0_92 = arith.constant 0 : index
    %c0_93 = arith.constant 0 : index
    %234 = vector.load %arg8[%c1_91, %c0_92, %c0_93] : memref<2x1x96xf32, #tpu.memory_space<vmem>>, vector<1x1x96xf32>
    %235 = vector.shape_cast %234 : vector<1x1x96xf32> to vector<1x96xf32>
    %236 = vector.broadcast %235 : vector<1x96xf32> to vector<16x96xf32>
    %237 = arith.addf %233, %236 : vector<16x96xf32>
    %238 = arith.truncf %237 : vector<16x96xf32> to vector<16x96xbf16>
    %239 = vector.extract_strided_slice %238 {offsets = [0, 0], sizes = [16, 8], strides = [1, 1]} : vector<16x96xbf16> to vector<16x8xbf16>
    %240 = vector.shape_cast %239 : vector<16x8xbf16> to vector<2x8x8xbf16>
    %241 = vector.extract_strided_slice %238 {offsets = [0, 32], sizes = [16, 8], strides = [1, 1]} : vector<16x96xbf16> to vector<16x8xbf16>
    %242 = vector.shape_cast %241 : vector<16x8xbf16> to vector<2x8x8xbf16>
    %243 = vector.extract_strided_slice %238 {offsets = [0, 64], sizes = [16, 8], strides = [1, 1]} : vector<16x96xbf16> to vector<16x8xbf16>
    %244 = vector.shape_cast %243 : vector<16x8xbf16> to vector<2x8x8xbf16>
    "tpu.trace_start"() <{level = 10 : i32, message = "bqd,bkd->bqk"}> : () -> ()
    %cst_94 = arith.constant dense<0.000000e+00> : vector<2x8x8xf32>
    %245 = tpu.matmul %240, %242, %cst_94 {dimension_numbers = #tpu.dot_dimension_numbers<[2], [2], [1], [1], [0, 0, 0, 1, 1, 1], [0], [0]>} : vector<2x8x8xbf16>, vector<2x8x8xbf16>, vector<2x8x8xf32> -> vector<2x8x8xf32>
    "tpu.trace_stop"() : () -> ()
    %246 = vector.broadcast %40 : vector<2x1x8xf32> to vector<2x8x8xf32>
    %247 = arith.addf %245, %246 : vector<2x8x8xf32>
    %cst_95 = arith.constant dense<0xFF800000> : vector<2x8xf32>
    %248 = vector.multi_reduction <maximumf>, %247, %cst_95 [2] : vector<2x8x8xf32> to vector<2x8xf32>
    %249 = vector.shape_cast %248 : vector<2x8xf32> to vector<2x8x1xf32>
    %250 = vector.broadcast %249 : vector<2x8x1xf32> to vector<2x8x8xf32>
    %251 = arith.subf %247, %250 : vector<2x8x8xf32>
    %252 = math.exp %251 : vector<2x8x8xf32>
    %cst_96 = arith.constant dense<0.000000e+00> : vector<2x8xf32>
    %253 = vector.multi_reduction <add>, %252, %cst_96 [2] : vector<2x8x8xf32> to vector<2x8xf32>
    %254 = vector.shape_cast %253 : vector<2x8xf32> to vector<2x8x1xf32>
    %255 = tpu.reciprocal %254 {approx = true} : vector<2x8x1xf32> -> vector<2x8x1xf32>
    %256 = vector.broadcast %255 : vector<2x8x1xf32> to vector<2x8x8xf32>
    %257 = arith.mulf %252, %256 : vector<2x8x8xf32>
    %258 = arith.truncf %257 : vector<2x8x8xf32> to vector<2x8x8xbf16>
    "tpu.trace_start"() <{level = 10 : i32, message = "bqk,bkd->bqd"}> : () -> ()
    %cst_97 = arith.constant dense<0.000000e+00> : vector<2x8x8xf32>
    %259 = tpu.matmul %258, %244, %cst_97 {dimension_numbers = #tpu.dot_dimension_numbers<[2], [1], [1], [2], [0, 0, 0, 1, 1, 2], [0], [0]>} : vector<2x8x8xbf16>, vector<2x8x8xbf16>, vector<2x8x8xf32> -> vector<2x8x8xf32>
    "tpu.trace_stop"() : () -> ()
    %260 = vector.shape_cast %259 : vector<2x8x8xf32> to vector<16x8xf32>
    %261 = vector.extract_strided_slice %238 {offsets = [0, 8], sizes = [16, 8], strides = [1, 1]} : vector<16x96xbf16> to vector<16x8xbf16>
    %262 = vector.shape_cast %261 : vector<16x8xbf16> to vector<2x8x8xbf16>
    %263 = vector.extract_strided_slice %238 {offsets = [0, 40], sizes = [16, 8], strides = [1, 1]} : vector<16x96xbf16> to vector<16x8xbf16>
    %264 = vector.shape_cast %263 : vector<16x8xbf16> to vector<2x8x8xbf16>
    %265 = vector.extract_strided_slice %238 {offsets = [0, 72], sizes = [16, 8], strides = [1, 1]} : vector<16x96xbf16> to vector<16x8xbf16>
    %266 = vector.shape_cast %265 : vector<16x8xbf16> to vector<2x8x8xbf16>
    "tpu.trace_start"() <{level = 10 : i32, message = "bqd,bkd->bqk"}> : () -> ()
    %cst_98 = arith.constant dense<0.000000e+00> : vector<2x8x8xf32>
    %267 = tpu.matmul %262, %264, %cst_98 {dimension_numbers = #tpu.dot_dimension_numbers<[2], [2], [1], [1], [0, 0, 0, 1, 1, 1], [0], [0]>} : vector<2x8x8xbf16>, vector<2x8x8xbf16>, vector<2x8x8xf32> -> vector<2x8x8xf32>
    "tpu.trace_stop"() : () -> ()
    %268 = vector.broadcast %40 : vector<2x1x8xf32> to vector<2x8x8xf32>
    %269 = arith.addf %267, %268 : vector<2x8x8xf32>
    %cst_99 = arith.constant dense<0xFF800000> : vector<2x8xf32>
    %270 = vector.multi_reduction <maximumf>, %269, %cst_99 [2] : vector<2x8x8xf32> to vector<2x8xf32>
    %271 = vector.shape_cast %270 : vector<2x8xf32> to vector<2x8x1xf32>
    %272 = vector.broadcast %271 : vector<2x8x1xf32> to vector<2x8x8xf32>
    %273 = arith.subf %269, %272 : vector<2x8x8xf32>
    %274 = math.exp %273 : vector<2x8x8xf32>
    %cst_100 = arith.constant dense<0.000000e+00> : vector<2x8xf32>
    %275 = vector.multi_reduction <add>, %274, %cst_100 [2] : vector<2x8x8xf32> to vector<2x8xf32>
    %276 = vector.shape_cast %275 : vector<2x8xf32> to vector<2x8x1xf32>
    %277 = tpu.reciprocal %276 {approx = true} : vector<2x8x1xf32> -> vector<2x8x1xf32>
    %278 = vector.broadcast %277 : vector<2x8x1xf32> to vector<2x8x8xf32>
    %279 = arith.mulf %274, %278 : vector<2x8x8xf32>
    %280 = arith.truncf %279 : vector<2x8x8xf32> to vector<2x8x8xbf16>
    "tpu.trace_start"() <{level = 10 : i32, message = "bqk,bkd->bqd"}> : () -> ()
    %cst_101 = arith.constant dense<0.000000e+00> : vector<2x8x8xf32>
    %281 = tpu.matmul %280, %266, %cst_101 {dimension_numbers = #tpu.dot_dimension_numbers<[2], [1], [1], [2], [0, 0, 0, 1, 1, 2], [0], [0]>} : vector<2x8x8xbf16>, vector<2x8x8xbf16>, vector<2x8x8xf32> -> vector<2x8x8xf32>
    "tpu.trace_stop"() : () -> ()
    %282 = vector.shape_cast %281 : vector<2x8x8xf32> to vector<16x8xf32>
    %283 = vector.extract_strided_slice %238 {offsets = [0, 16], sizes = [16, 8], strides = [1, 1]} : vector<16x96xbf16> to vector<16x8xbf16>
    %284 = vector.shape_cast %283 : vector<16x8xbf16> to vector<2x8x8xbf16>
    %285 = vector.extract_strided_slice %238 {offsets = [0, 48], sizes = [16, 8], strides = [1, 1]} : vector<16x96xbf16> to vector<16x8xbf16>
    %286 = vector.shape_cast %285 : vector<16x8xbf16> to vector<2x8x8xbf16>
    %287 = vector.extract_strided_slice %238 {offsets = [0, 80], sizes = [16, 8], strides = [1, 1]} : vector<16x96xbf16> to vector<16x8xbf16>
    %288 = vector.shape_cast %287 : vector<16x8xbf16> to vector<2x8x8xbf16>
    "tpu.trace_start"() <{level = 10 : i32, message = "bqd,bkd->bqk"}> : () -> ()
    %cst_102 = arith.constant dense<0.000000e+00> : vector<2x8x8xf32>
    %289 = tpu.matmul %284, %286, %cst_102 {dimension_numbers = #tpu.dot_dimension_numbers<[2], [2], [1], [1], [0, 0, 0, 1, 1, 1], [0], [0]>} : vector<2x8x8xbf16>, vector<2x8x8xbf16>, vector<2x8x8xf32> -> vector<2x8x8xf32>
    "tpu.trace_stop"() : () -> ()
    %290 = vector.broadcast %40 : vector<2x1x8xf32> to vector<2x8x8xf32>
    %291 = arith.addf %289, %290 : vector<2x8x8xf32>
    %cst_103 = arith.constant dense<0xFF800000> : vector<2x8xf32>
    %292 = vector.multi_reduction <maximumf>, %291, %cst_103 [2] : vector<2x8x8xf32> to vector<2x8xf32>
    %293 = vector.shape_cast %292 : vector<2x8xf32> to vector<2x8x1xf32>
    %294 = vector.broadcast %293 : vector<2x8x1xf32> to vector<2x8x8xf32>
    %295 = arith.subf %291, %294 : vector<2x8x8xf32>
    %296 = math.exp %295 : vector<2x8x8xf32>
    %cst_104 = arith.constant dense<0.000000e+00> : vector<2x8xf32>
    %297 = vector.multi_reduction <add>, %296, %cst_104 [2] : vector<2x8x8xf32> to vector<2x8xf32>
    %298 = vector.shape_cast %297 : vector<2x8xf32> to vector<2x8x1xf32>
    %299 = tpu.reciprocal %298 {approx = true} : vector<2x8x1xf32> -> vector<2x8x1xf32>
    %300 = vector.broadcast %299 : vector<2x8x1xf32> to vector<2x8x8xf32>
    %301 = arith.mulf %296, %300 : vector<2x8x8xf32>
    %302 = arith.truncf %301 : vector<2x8x8xf32> to vector<2x8x8xbf16>
    "tpu.trace_start"() <{level = 10 : i32, message = "bqk,bkd->bqd"}> : () -> ()
    %cst_105 = arith.constant dense<0.000000e+00> : vector<2x8x8xf32>
    %303 = tpu.matmul %302, %288, %cst_105 {dimension_numbers = #tpu.dot_dimension_numbers<[2], [1], [1], [2], [0, 0, 0, 1, 1, 2], [0], [0]>} : vector<2x8x8xbf16>, vector<2x8x8xbf16>, vector<2x8x8xf32> -> vector<2x8x8xf32>
    "tpu.trace_stop"() : () -> ()
    %304 = vector.shape_cast %303 : vector<2x8x8xf32> to vector<16x8xf32>
    %305 = vector.extract_strided_slice %238 {offsets = [0, 24], sizes = [16, 8], strides = [1, 1]} : vector<16x96xbf16> to vector<16x8xbf16>
    %306 = vector.shape_cast %305 : vector<16x8xbf16> to vector<2x8x8xbf16>
    %307 = vector.extract_strided_slice %238 {offsets = [0, 56], sizes = [16, 8], strides = [1, 1]} : vector<16x96xbf16> to vector<16x8xbf16>
    %308 = vector.shape_cast %307 : vector<16x8xbf16> to vector<2x8x8xbf16>
    %309 = vector.extract_strided_slice %238 {offsets = [0, 88], sizes = [16, 8], strides = [1, 1]} : vector<16x96xbf16> to vector<16x8xbf16>
    %310 = vector.shape_cast %309 : vector<16x8xbf16> to vector<2x8x8xbf16>
    "tpu.trace_start"() <{level = 10 : i32, message = "bqd,bkd->bqk"}> : () -> ()
    %cst_106 = arith.constant dense<0.000000e+00> : vector<2x8x8xf32>
    %311 = tpu.matmul %306, %308, %cst_106 {dimension_numbers = #tpu.dot_dimension_numbers<[2], [2], [1], [1], [0, 0, 0, 1, 1, 1], [0], [0]>} : vector<2x8x8xbf16>, vector<2x8x8xbf16>, vector<2x8x8xf32> -> vector<2x8x8xf32>
    "tpu.trace_stop"() : () -> ()
    %312 = vector.broadcast %40 : vector<2x1x8xf32> to vector<2x8x8xf32>
    %313 = arith.addf %311, %312 : vector<2x8x8xf32>
    %cst_107 = arith.constant dense<0xFF800000> : vector<2x8xf32>
    %314 = vector.multi_reduction <maximumf>, %313, %cst_107 [2] : vector<2x8x8xf32> to vector<2x8xf32>
    %315 = vector.shape_cast %314 : vector<2x8xf32> to vector<2x8x1xf32>
    %316 = vector.broadcast %315 : vector<2x8x1xf32> to vector<2x8x8xf32>
    %317 = arith.subf %313, %316 : vector<2x8x8xf32>
    %318 = math.exp %317 : vector<2x8x8xf32>
    %cst_108 = arith.constant dense<0.000000e+00> : vector<2x8xf32>
    %319 = vector.multi_reduction <add>, %318, %cst_108 [2] : vector<2x8x8xf32> to vector<2x8xf32>
    %320 = vector.shape_cast %319 : vector<2x8xf32> to vector<2x8x1xf32>
    %321 = tpu.reciprocal %320 {approx = true} : vector<2x8x1xf32> -> vector<2x8x1xf32>
    %322 = vector.broadcast %321 : vector<2x8x1xf32> to vector<2x8x8xf32>
    %323 = arith.mulf %318, %322 : vector<2x8x8xf32>
    %324 = arith.truncf %323 : vector<2x8x8xf32> to vector<2x8x8xbf16>
    "tpu.trace_start"() <{level = 10 : i32, message = "bqk,bkd->bqd"}> : () -> ()
    %cst_109 = arith.constant dense<0.000000e+00> : vector<2x8x8xf32>
    %325 = tpu.matmul %324, %310, %cst_109 {dimension_numbers = #tpu.dot_dimension_numbers<[2], [1], [1], [2], [0, 0, 0, 1, 1, 2], [0], [0]>} : vector<2x8x8xbf16>, vector<2x8x8xbf16>, vector<2x8x8xf32> -> vector<2x8x8xf32>
    "tpu.trace_stop"() : () -> ()
    %326 = vector.shape_cast %325 : vector<2x8x8xf32> to vector<16x8xf32>
    %327 = tpu.concatenate %260, %282, %304, %326 in 1 : vector<16x8xf32>, vector<16x8xf32>, vector<16x8xf32>, vector<16x8xf32> -> vector<16x32xf32>
    %c1_110 = arith.constant 1 : index
    %c0_111 = arith.constant 0 : index
    %c0_112 = arith.constant 0 : index
    %328 = vector.load %arg9[%c1_110, %c0_111, %c0_112] : memref<2x32x32xbf16, #tpu.memory_space<vmem>>, vector<1x32x32xbf16>
    %329 = vector.shape_cast %328 : vector<1x32x32xbf16> to vector<32x32xbf16>
    %330 = arith.truncf %327 : vector<16x32xf32> to vector<16x32xbf16>
    %cst_113 = arith.constant dense<0.000000e+00> : vector<16x32xf32>
    %331 = tpu.matmul %330, %329, %cst_113 {dimension_numbers = #tpu.dot_dimension_numbers<[1], [0], [0], [1], [0, 0, 1, 1], [], []>} : vector<16x32xbf16>, vector<32x32xbf16>, vector<16x32xf32> -> vector<16x32xf32>
    %c1_114 = arith.constant 1 : index
    %c0_115 = arith.constant 0 : index
    %c0_116 = arith.constant 0 : index
    %332 = vector.load %arg10[%c1_114, %c0_115, %c0_116] : memref<2x1x32xf32, #tpu.memory_space<vmem>>, vector<1x1x32xf32>
    %333 = vector.shape_cast %332 : vector<1x1x32xf32> to vector<1x32xf32>
    %334 = vector.broadcast %333 : vector<1x32xf32> to vector<16x32xf32>
    %335 = arith.addf %331, %334 : vector<16x32xf32>
    %336 = arith.addf %229, %335 : vector<16x32xf32>
    %c1_117 = arith.constant 1 : index
    %c0_118 = arith.constant 0 : index
    %c0_119 = arith.constant 0 : index
    %337 = vector.load %arg11[%c1_117, %c0_118, %c0_119] : memref<2x1x32xf32, #tpu.memory_space<vmem>>, vector<1x1x32xf32>
    %338 = vector.shape_cast %337 : vector<1x1x32xf32> to vector<1x32xf32>
    %c1_120 = arith.constant 1 : index
    %c0_121 = arith.constant 0 : index
    %c0_122 = arith.constant 0 : index
    %339 = vector.load %arg12[%c1_120, %c0_121, %c0_122] : memref<2x1x32xf32, #tpu.memory_space<vmem>>, vector<1x1x32xf32>
    %340 = vector.shape_cast %339 : vector<1x1x32xf32> to vector<1x32xf32>
    %cst_123 = arith.constant dense<0.000000e+00> : vector<16xf32>
    %341 = vector.multi_reduction <add>, %336, %cst_123 [1] : vector<16x32xf32> to vector<16xf32>
    %342 = vector.shape_cast %341 : vector<16xf32> to vector<16x1xf32>
    %cst_124 = arith.constant 3.200000e+01 : f32
    %343 = vector.broadcast %cst_124 : f32 to vector<16x1xf32>
    %344 = arith.divf %342, %343 : vector<16x1xf32>
    %345 = vector.broadcast %344 : vector<16x1xf32> to vector<16x32xf32>
    %346 = arith.subf %336, %345 : vector<16x32xf32>
    %347 = arith.mulf %346, %346 : vector<16x32xf32>
    %cst_125 = arith.constant dense<0.000000e+00> : vector<16xf32>
    %348 = vector.multi_reduction <add>, %347, %cst_125 [1] : vector<16x32xf32> to vector<16xf32>
    %349 = vector.shape_cast %348 : vector<16xf32> to vector<16x1xf32>
    %cst_126 = arith.constant 3.200000e+01 : f32
    %350 = vector.broadcast %cst_126 : f32 to vector<16x1xf32>
    %351 = arith.divf %349, %350 : vector<16x1xf32>
    %352 = vector.broadcast %344 : vector<16x1xf32> to vector<16x32xf32>
    %353 = arith.subf %336, %352 : vector<16x32xf32>
    %cst_127 = arith.constant 1.000000e-07 : f32
    %354 = vector.broadcast %cst_127 : f32 to vector<16x1xf32>
    %355 = arith.addf %351, %354 : vector<16x1xf32>
    %356 = math.rsqrt %355 : vector<16x1xf32>
    %357 = vector.broadcast %356 : vector<16x1xf32> to vector<16x32xf32>
    %358 = arith.mulf %353, %357 : vector<16x32xf32>
    %359 = vector.broadcast %338 : vector<1x32xf32> to vector<16x32xf32>
    %360 = arith.mulf %358, %359 : vector<16x32xf32>
    %361 = vector.broadcast %340 : vector<1x32xf32> to vector<16x32xf32>
    %362 = arith.addf %360, %361 : vector<16x32xf32>
    %c1_128 = arith.constant 1 : index
    %c0_129 = arith.constant 0 : index
    %c0_130 = arith.constant 0 : index
    %363 = vector.load %arg13[%c1_128, %c0_129, %c0_130] : memref<2x32x64xbf16, #tpu.memory_space<vmem>>, vector<1x32x64xbf16>
    %364 = vector.shape_cast %363 : vector<1x32x64xbf16> to vector<32x64xbf16>
    %365 = arith.truncf %362 : vector<16x32xf32> to vector<16x32xbf16>
    %cst_131 = arith.constant dense<0.000000e+00> : vector<16x64xf32>
    %366 = tpu.matmul %365, %364, %cst_131 {dimension_numbers = #tpu.dot_dimension_numbers<[1], [0], [0], [1], [0, 0, 1, 1], [], []>} : vector<16x32xbf16>, vector<32x64xbf16>, vector<16x64xf32> -> vector<16x64xf32>
    %c1_132 = arith.constant 1 : index
    %c0_133 = arith.constant 0 : index
    %c0_134 = arith.constant 0 : index
    %367 = vector.load %arg14[%c1_132, %c0_133, %c0_134] : memref<2x1x64xf32, #tpu.memory_space<vmem>>, vector<1x1x64xf32>
    %368 = vector.shape_cast %367 : vector<1x1x64xf32> to vector<1x64xf32>
    %369 = vector.broadcast %368 : vector<1x64xf32> to vector<16x64xf32>
    %370 = arith.addf %366, %369 : vector<16x64xf32>
    %371 = arith.mulf %370, %370 : vector<16x64xf32>
    %372 = arith.mulf %370, %371 : vector<16x64xf32>
    %cst_135 = arith.constant 4.471500e-02 : f32
    %373 = vector.broadcast %cst_135 : f32 to vector<16x64xf32>
    %374 = arith.mulf %373, %372 : vector<16x64xf32>
    %375 = arith.addf %370, %374 : vector<16x64xf32>
    %cst_136 = arith.constant 0.797884583 : f32
    %376 = vector.broadcast %cst_136 : f32 to vector<16x64xf32>
    %377 = arith.mulf %376, %375 : vector<16x64xf32>
    %378 = math.tanh %377 : vector<16x64xf32>
    %cst_137 = arith.constant 1.000000e+00 : f32
    %379 = vector.broadcast %cst_137 : f32 to vector<16x64xf32>
    %380 = arith.addf %379, %378 : vector<16x64xf32>
    %cst_138 = arith.constant 5.000000e-01 : f32
    %381 = vector.broadcast %cst_138 : f32 to vector<16x64xf32>
    %382 = arith.mulf %381, %380 : vector<16x64xf32>
    %383 = arith.mulf %370, %382 : vector<16x64xf32>
    %c1_139 = arith.constant 1 : index
    %c0_140 = arith.constant 0 : index
    %c0_141 = arith.constant 0 : index
    %384 = vector.load %arg15[%c1_139, %c0_140, %c0_141] : memref<2x64x32xbf16, #tpu.memory_space<vmem>>, vector<1x64x32xbf16>
    %385 = vector.shape_cast %384 : vector<1x64x32xbf16> to vector<64x32xbf16>
    %386 = arith.truncf %383 : vector<16x64xf32> to vector<16x64xbf16>
    %cst_142 = arith.constant dense<0.000000e+00> : vector<16x32xf32>
    %387 = tpu.matmul %386, %385, %cst_142 {dimension_numbers = #tpu.dot_dimension_numbers<[1], [0], [0], [1], [0, 0, 1, 1], [], []>} : vector<16x64xbf16>, vector<64x32xbf16>, vector<16x32xf32> -> vector<16x32xf32>
    %c1_143 = arith.constant 1 : index
    %c0_144 = arith.constant 0 : index
    %c0_145 = arith.constant 0 : index
    %388 = vector.load %arg16[%c1_143, %c0_144, %c0_145] : memref<2x1x32xf32, #tpu.memory_space<vmem>>, vector<1x1x32xf32>
    %389 = vector.shape_cast %388 : vector<1x1x32xf32> to vector<1x32xf32>
    %390 = vector.broadcast %389 : vector<1x32xf32> to vector<16x32xf32>
    %391 = arith.addf %387, %390 : vector<16x32xf32>
    %392 = arith.addf %362, %391 : vector<16x32xf32>
    %c1_146 = arith.constant 1 : index
    %c0_147 = arith.constant 0 : index
    %c0_148 = arith.constant 0 : index
    %393 = vector.load %arg17[%c1_146, %c0_147, %c0_148] : memref<2x1x32xf32, #tpu.memory_space<vmem>>, vector<1x1x32xf32>
    %394 = vector.shape_cast %393 : vector<1x1x32xf32> to vector<1x32xf32>
    %c1_149 = arith.constant 1 : index
    %c0_150 = arith.constant 0 : index
    %c0_151 = arith.constant 0 : index
    %395 = vector.load %arg18[%c1_149, %c0_150, %c0_151] : memref<2x1x32xf32, #tpu.memory_space<vmem>>, vector<1x1x32xf32>
    %396 = vector.shape_cast %395 : vector<1x1x32xf32> to vector<1x32xf32>
    %cst_152 = arith.constant dense<0.000000e+00> : vector<16xf32>
    %397 = vector.multi_reduction <add>, %392, %cst_152 [1] : vector<16x32xf32> to vector<16xf32>
    %398 = vector.shape_cast %397 : vector<16xf32> to vector<16x1xf32>
    %cst_153 = arith.constant 3.200000e+01 : f32
    %399 = vector.broadcast %cst_153 : f32 to vector<16x1xf32>
    %400 = arith.divf %398, %399 : vector<16x1xf32>
    %401 = vector.broadcast %400 : vector<16x1xf32> to vector<16x32xf32>
    %402 = arith.subf %392, %401 : vector<16x32xf32>
    %403 = arith.mulf %402, %402 : vector<16x32xf32>
    %cst_154 = arith.constant dense<0.000000e+00> : vector<16xf32>
    %404 = vector.multi_reduction <add>, %403, %cst_154 [1] : vector<16x32xf32> to vector<16xf32>
    %405 = vector.shape_cast %404 : vector<16xf32> to vector<16x1xf32>
    %cst_155 = arith.constant 3.200000e+01 : f32
    %406 = vector.broadcast %cst_155 : f32 to vector<16x1xf32>
    %407 = arith.divf %405, %406 : vector<16x1xf32>
    %408 = vector.broadcast %400 : vector<16x1xf32> to vector<16x32xf32>
    %409 = arith.subf %392, %408 : vector<16x32xf32>
    %cst_156 = arith.constant 1.000000e-07 : f32
    %410 = vector.broadcast %cst_156 : f32 to vector<16x1xf32>
    %411 = arith.addf %407, %410 : vector<16x1xf32>
    %412 = math.rsqrt %411 : vector<16x1xf32>
    %413 = vector.broadcast %412 : vector<16x1xf32> to vector<16x32xf32>
    %414 = arith.mulf %409, %413 : vector<16x32xf32>
    %415 = vector.broadcast %394 : vector<1x32xf32> to vector<16x32xf32>
    %416 = arith.mulf %414, %415 : vector<16x32xf32>
    %417 = vector.broadcast %396 : vector<1x32xf32> to vector<16x32xf32>
    %418 = arith.addf %416, %417 : vector<16x32xf32>
    %419 = vector.extract_strided_slice %418 {offsets = [0, 0], sizes = [1, 32], strides = [1, 1]} : vector<16x32xf32> to vector<1x32xf32>
    %420 = vector.extract_strided_slice %418 {offsets = [8, 0], sizes = [1, 32], strides = [1, 1]} : vector<16x32xf32> to vector<1x32xf32>
    %421 = tpu.concatenate %419, %420 in 0 : vector<1x32xf32>, vector<1x32xf32> -> vector<2x32xf32>
    %c0_157 = arith.constant 0 : index
    %c0_158 = arith.constant 0 : index
    %422 = vector.load %arg19[%c0_157, %c0_158] : memref<32x6xbf16, #tpu.memory_space<vmem>>, vector<32x6xbf16>
    %423 = arith.truncf %421 : vector<2x32xf32> to vector<2x32xbf16>
    %cst_159 = arith.constant dense<0.000000e+00> : vector<2x6xf32>
    %424 = tpu.matmul %423, %422, %cst_159 {dimension_numbers = #tpu.dot_dimension_numbers<[1], [0], [0], [1], [0, 0, 1, 1], [], []>} : vector<2x32xbf16>, vector<32x6xbf16>, vector<2x6xf32> -> vector<2x6xf32>
    %c0_160 = arith.constant 0 : index
    %c0_161 = arith.constant 0 : index
    %425 = vector.load %arg20[%c0_160, %c0_161] : memref<1x6xf32, #tpu.memory_space<vmem>>, vector<1x6xf32>
    %426 = vector.broadcast %425 : vector<1x6xf32> to vector<2x6xf32>
    %427 = arith.addf %424, %426 : vector<2x6xf32>
    %cst_162 = arith.constant dense<0xFF800000> : vector<2xf32>
    %428 = vector.multi_reduction <maximumf>, %427, %cst_162 [1] : vector<2x6xf32> to vector<2xf32>
    %429 = vector.shape_cast %428 : vector<2xf32> to vector<2x1xf32>
    %430 = vector.broadcast %429 : vector<2x1xf32> to vector<2x6xf32>
    %431 = arith.subf %427, %430 : vector<2x6xf32>
    %432 = math.exp %431 : vector<2x6xf32>
    %cst_163 = arith.constant dense<0.000000e+00> : vector<2xf32>
    %433 = vector.multi_reduction <add>, %432, %cst_163 [1] : vector<2x6xf32> to vector<2xf32>
    %434 = vector.shape_cast %433 : vector<2xf32> to vector<2x1xf32>
    %435 = vector.broadcast %434 : vector<2x1xf32> to vector<2x6xf32>
    %436 = arith.divf %432, %435 : vector<2x6xf32>
    %c0_164 = arith.constant 0 : index
    %c0_165 = arith.constant 0 : index
    %437 = vector.load %arg21[%c0_164, %c0_165] : memref<2x6xf32, #tpu.memory_space<vmem>>, vector<2x6xf32>
    tpu.vector_store %arg21[%c0_164, %c0_165], %436 {strides = array<i32>} : memref<2x6xf32, #tpu.memory_space<vmem>>, vector<2x6xf32>,
    return
  }
  func.func @transform_0(%arg0: i32) -> (i32, i32) {
    %c0_i32 = arith.constant 0 : i32
    %c0_i32_0 = arith.constant 0 : i32
    %c0_i32_1 = arith.constant 0 : i32
    return %c0_i32, %c0_i32_0 : i32, i32
  }
  func.func @transform_1(%arg0: i32) -> (i32, i32) {
    %c0_i32 = arith.constant 0 : i32
    %c0_i32_0 = arith.constant 0 : i32
    %c0_i32_1 = arith.constant 0 : i32
    return %c0_i32, %c0_i32_0 : i32, i32
  }
  func.func @transform_2(%arg0: i32) -> (i32, i32) {
    %c0_i32 = arith.constant 0 : i32
    %c0_i32_0 = arith.constant 0 : i32
    %c0_i32_1 = arith.constant 0 : i32
    return %c0_i32, %c0_i32_0 : i32, i32
  }
  func.func @transform_3(%arg0: i32) -> (i32, i32) {
    %c0_i32 = arith.constant 0 : i32
    %c0_i32_0 = arith.constant 0 : i32
    %c0_i32_1 = arith.constant 0 : i32
    return %c0_i32, %c0_i32_0 : i32, i32
  }
  func.func @transform_4(%arg0: i32) -> (i32, i32) {
    %c0_i32 = arith.constant 0 : i32
    %c0_i32_0 = arith.constant 0 : i32
    %c0_i32_1 = arith.constant 0 : i32
    return %c0_i32, %c0_i32_0 : i32, i32
  }
  func.func @transform_5(%arg0: i32) -> (i32, i32) {
    %c0_i32 = arith.constant 0 : i32
    %c0_i32_0 = arith.constant 0 : i32
    %c0_i32_1 = arith.constant 0 : i32
    return %c0_i32, %c0_i32_0 : i32, i32
  }
  func.func @transform_6(%arg0: i32) -> (i32, i32, i32) {
    %c0_i32 = arith.constant 0 : i32
    %c0_i32_0 = arith.constant 0 : i32
    %c0_i32_1 = arith.constant 0 : i32
    %c0_i32_2 = arith.constant 0 : i32
    return %c0_i32, %c0_i32_0, %c0_i32_1 : i32, i32, i32
  }
  func.func @transform_7(%arg0: i32) -> (i32, i32, i32) {
    %c0_i32 = arith.constant 0 : i32
    %c0_i32_0 = arith.constant 0 : i32
    %c0_i32_1 = arith.constant 0 : i32
    %c0_i32_2 = arith.constant 0 : i32
    return %c0_i32, %c0_i32_0, %c0_i32_1 : i32, i32, i32
  }
  func.func @transform_8(%arg0: i32) -> (i32, i32, i32) {
    %c0_i32 = arith.constant 0 : i32
    %c0_i32_0 = arith.constant 0 : i32
    %c0_i32_1 = arith.constant 0 : i32
    %c0_i32_2 = arith.constant 0 : i32
    return %c0_i32, %c0_i32_0, %c0_i32_1 : i32, i32, i32
  }
  func.func @transform_9(%arg0: i32) -> (i32, i32, i32) {
    %c0_i32 = arith.constant 0 : i32
    %c0_i32_0 = arith.constant 0 : i32
    %c0_i32_1 = arith.constant 0 : i32
    %c0_i32_2 = arith.constant 0 : i32
    return %c0_i32, %c0_i32_0, %c0_i32_1 : i32, i32, i32
  }
  func.func @transform_10(%arg0: i32) -> (i32, i32, i32) {
    %c0_i32 = arith.constant 0 : i32
    %c0_i32_0 = arith.constant 0 : i32
    %c0_i32_1 = arith.constant 0 : i32
    %c0_i32_2 = arith.constant 0 : i32
    return %c0_i32, %c0_i32_0, %c0_i32_1 : i32, i32, i32
  }
  func.func @transform_11(%arg0: i32) -> (i32, i32, i32) {
    %c0_i32 = arith.constant 0 : i32
    %c0_i32_0 = arith.constant 0 : i32
    %c0_i32_1 = arith.constant 0 : i32
    %c0_i32_2 = arith.constant 0 : i32
    return %c0_i32, %c0_i32_0, %c0_i32_1 : i32, i32, i32
  }
  func.func @transform_12(%arg0: i32) -> (i32, i32, i32) {
    %c0_i32 = arith.constant 0 : i32
    %c0_i32_0 = arith.constant 0 : i32
    %c0_i32_1 = arith.constant 0 : i32
    %c0_i32_2 = arith.constant 0 : i32
    return %c0_i32, %c0_i32_0, %c0_i32_1 : i32, i32, i32
  }
  func.func @transform_13(%arg0: i32) -> (i32, i32, i32) {
    %c0_i32 = arith.constant 0 : i32
    %c0_i32_0 = arith.constant 0 : i32
    %c0_i32_1 = arith.constant 0 : i32
    %c0_i32_2 = arith.constant 0 : i32
    return %c0_i32, %c0_i32_0, %c0_i32_1 : i32, i32, i32
  }
  func.func @transform_14(%arg0: i32) -> (i32, i32, i32) {
    %c0_i32 = arith.constant 0 : i32
    %c0_i32_0 = arith.constant 0 : i32
    %c0_i32_1 = arith.constant 0 : i32
    %c0_i32_2 = arith.constant 0 : i32
    return %c0_i32, %c0_i32_0, %c0_i32_1 : i32, i32, i32
  }
  func.func @transform_15(%arg0: i32) -> (i32, i32, i32) {
    %c0_i32 = arith.constant 0 : i32
    %c0_i32_0 = arith.constant 0 : i32
    %c0_i32_1 = arith.constant 0 : i32
    %c0_i32_2 = arith.constant 0 : i32
    return %c0_i32, %c0_i32_0, %c0_i32_1 : i32, i32, i32
  }
  func.func @transform_16(%arg0: i32) -> (i32, i32, i32) {
    %c0_i32 = arith.constant 0 : i32
    %c0_i32_0 = arith.constant 0 : i32
    %c0_i32_1 = arith.constant 0 : i32
    %c0_i32_2 = arith.constant 0 : i32
    return %c0_i32, %c0_i32_0, %c0_i32_1 : i32, i32, i32
  }
  func.func @transform_17(%arg0: i32) -> (i32, i32, i32) {
    %c0_i32 = arith.constant 0 : i32
    %c0_i32_0 = arith.constant 0 : i32
    %c0_i32_1 = arith.constant 0 : i32
    %c0_i32_2 = arith.constant 0 : i32
    return %c0_i32, %c0_i32_0, %c0_i32_1 : i32, i32, i32
  }
  func.func @transform_18(%arg0: i32) -> (i32, i32) {
    %c0_i32 = arith.constant 0 : i32
    %c0_i32_0 = arith.constant 0 : i32
    %c0_i32_1 = arith.constant 0 : i32
    return %c0_i32, %c0_i32_0 : i32, i32
  }
  func.func @transform_19(%arg0: i32) -> (i32, i32) {
    %c0_i32 = arith.constant 0 : i32
    %c0_i32_0 = arith.constant 0 : i32
    %c0_i32_1 = arith.constant 0 : i32
    return %c0_i32, %c0_i32_0 : i32, i32
  }
  func.func @transform_20(%arg0: i32) -> (i32, i32) {
    %c0_i32 = arith.constant 0 : i32
    %c0_i32_0 = arith.constant 0 : i32
    %c0_i32_1 = arith.constant 0 : i32
    return %c0_i32, %c0_i32_0 : i32, i32
  }
}

</mosaic_0001>

<llo_original>
// kernel: custom_model_forward.1
$region0: #{custom_model_forward.1}
  #allocation0 [shape = 'u32[]', space=smem, size = 0x4, offset = 0x4, fixed_abs, tag = 'smem constant byte address 0x4 - core index']
  #allocation1 [shape = 'u32[72,128]{1,0:T(1,128)}', space=vmem, size = 0x9000, scoped, tag = 'internal scratch']
  %s0 = inlined_call_operand.vmem [shape: s32[16,1], index: 0, kind: input, shape index: {}]
  %s1 = inlined_call_operand.vmem [shape: s32[2,8], index: 1, kind: input, shape index: {}]
  %s2 = inlined_call_operand.vmem [shape: f32[128,32], index: 2, kind: input, shape index: {}]
  %s3 = inlined_call_operand.vmem [shape: f32[16,32], index: 3, kind: input, shape index: {}]
  %s4 = inlined_call_operand.vmem [shape: f32[1,32], index: 4, kind: input, shape index: {}]
  %s5 = inlined_call_operand.vmem [shape: f32[1,32], index: 5, kind: input, shape index: {}]
  %s6 = inlined_call_operand.vmem [shape: bf16[2,32,96], index: 6, kind: input, shape index: {}]
  %s7 = inlined_call_operand.vmem [shape: f32[2,1,96], index: 7, kind: input, shape index: {}]
  %s8 = inlined_call_operand.vmem [shape: bf16[2,32,32], index: 8, kind: input, shape index: {}]
  %s9 = inlined_call_operand.vmem [shape: f32[2,1,32], index: 9, kind: input, shape index: {}]
  %s10 = inlined_call_operand.vmem [shape: f32[2,1,32], index: 10, kind: input, shape index: {}]
  %s11 = inlined_call_operand.vmem [shape: f32[2,1,32], index: 11, kind: input, shape index: {}]
  %s12 = inlined_call_operand.vmem [shape: bf16[2,32,64], index: 12, kind: input, shape index: {}]
  %s13 = inlined_call_operand.vmem [shape: f32[2,1,64], index: 13, kind: input, shape index: {}]
  %s14 = inlined_call_operand.vmem [shape: bf16[2,64,32], index: 14, kind: input, shape index: {}]
  %s15 = inlined_call_operand.vmem [shape: f32[2,1,32], index: 15, kind: input, shape index: {}]
  %s16 = inlined_call_operand.vmem [shape: f32[2,1,32], index: 16, kind: input, shape index: {}]
  %s17 = inlined_call_operand.vmem [shape: f32[2,1,32], index: 17, kind: input, shape index: {}]
  %s18 = inlined_call_operand.vmem [shape: bf16[32,6], index: 18, kind: input, shape index: {}]
  %s19 = inlined_call_operand.vmem [shape: f32[1,6], index: 19, kind: input, shape index: {}]
  %s20 = inlined_call_operand.hbm [shape: f32[2,6], index: 20, kind: output, shape index: {}]
  %s21 = sld [smem:[#allocation0]]
  $region90: #{custom_model_forward.1} parent=0
    _
  %s23 = ssub.s32 1, %s21
  %s24 = scalar_select 0, %s23, %s21
  $region1: #{custom_model_forward.1} parent=0
    #allocation2 [shape = 'u8[1024]{0}', space=vmem, size = 0x400, scoped, tag = 'output window, operand 0, single buffered']
    #allocation3 [shape = 's32[1]{0}', space=sflag, size = 0x4, scoped, tag = 'scoped memory for custom_model_forward.1']
    %25 = vsyncpa [#allocation3], 0
    // Predicated region
    $region2: #{custom_model_forward.1} parent=1 // pred_check
      _
    $region3: #{custom_model_forward.1} parent=1 // pred_check_branch
      %27 = sbr.rel (0) target = $region5
    $region4: #{custom_model_forward.1} parent=1 // pred_region
      _
    $region5: #{custom_model_forward.1} parent=1 // pred_fallthru
      _
    // Predicated region
    $region6: #{custom_model_forward.1} parent=1 // pred_check
      _
    $region7: #{custom_model_forward.1} parent=1 // pred_check_branch
      %29 = sbr.rel (0) target = $region9
    $region8: #{custom_model_forward.1} parent=1 // pred_region
      _
    $region9: #{custom_model_forward.1} parent=1 // pred_fallthru
      _
    // Predicated region
    $region10: #{custom_model_forward.1} parent=1 // pred_check
      _
    $region11: #{custom_model_forward.1} parent=1 // pred_check_branch
      %31 = sbr.rel (0) target = $region13
    $region12: #{custom_model_forward.1} parent=1 // pred_region
      _
    $region13: #{custom_model_forward.1} parent=1 // pred_fallthru
      _
    // Predicated region
    $region14: #{custom_model_forward.1} parent=1 // pred_check
      _
    $region15: #{custom_model_forward.1} parent=1 // pred_check_branch
      %33 = sbr.rel (0) target = $region17
    $region16: #{custom_model_forward.1} parent=1 // pred_region
      _
    $region17: #{custom_model_forward.1} parent=1 // pred_fallthru
      _
    // Predicated region
    $region18: #{custom_model_forward.1} parent=1 // pred_check
      _
    $region19: #{custom_model_forward.1} parent=1 // pred_check_branch
      %35 = sbr.rel (0) target = $region21
    $region20: #{custom_model_forward.1} parent=1 // pred_region
      _
    $region21: #{custom_model_forward.1} parent=1 // pred_fallthru
      _
    // Predicated region
    $region22: #{custom_model_forward.1} parent=1 // pred_check
      _
    $region23: #{custom_model_forward.1} parent=1 // pred_check_branch
      %37 = sbr.rel (0) target = $region25
    $region24: #{custom_model_forward.1} parent=1 // pred_region
      _
    $region25: #{custom_model_forward.1} parent=1 // pred_fallthru
      _
    // Predicated region
    $region26: #{custom_model_forward.1} parent=1 // pred_check
      _
    $region27: #{custom_model_forward.1} parent=1 // pred_check_branch
      %39 = sbr.rel (0) target = $region29
    $region28: #{custom_model_forward.1} parent=1 // pred_region
      _
    $region29: #{custom_model_forward.1} parent=1 // pred_fallthru
      _
    // Predicated region
    $region30: #{custom_model_forward.1} parent=1 // pred_check
      _
    $region31: #{custom_model_forward.1} parent=1 // pred_check_branch
      %41 = sbr.rel (0) target = $region33
    $region32: #{custom_model_forward.1} parent=1 // pred_region
      _
    $region33: #{custom_model_forward.1} parent=1 // pred_fallthru
      _
    // Predicated region
    $region34: #{custom_model_forward.1} parent=1 // pred_check
      _
    $region35: #{custom_model_forward.1} parent=1 // pred_check_branch
      %43 = sbr.rel (0) target = $region37
    $region36: #{custom_model_forward.1} parent=1 // pred_region
      _
    $region37: #{custom_model_forward.1} parent=1 // pred_fallthru
      _
    // Predicated region
    $region38: #{custom_model_forward.1} parent=1 // pred_check
      _
    $region39: #{custom_model_forward.1} parent=1 // pred_check_branch
      %45 = sbr.rel (0) target = $region41
    $region40: #{custom_model_forward.1} parent=1 // pred_region
      _
    $region41: #{custom_model_forward.1} parent=1 // pred_fallthru
      _
    // Predicated region
    $region42: #{custom_model_forward.1} parent=1 // pred_check
      _
    $region43: #{custom_model_forward.1} parent=1 // pred_check_branch
      %47 = sbr.rel (0) target = $region45
    $region44: #{custom_model_forward.1} parent=1 // pred_region
      _
    $region45: #{custom_model_forward.1} parent=1 // pred_fallthru
      _
    // Predicated region
    $region46: #{custom_model_forward.1} parent=1 // pred_check
      _
    $region47: #{custom_model_forward.1} parent=1 // pred_check_branch
      %49 = sbr.rel (0) target = $region49
    $region48: #{custom_model_forward.1} parent=1 // pred_region
      _
    $region49: #{custom_model_forward.1} parent=1 // pred_fallthru
      _
    // Predicated region
    $region50: #{custom_model_forward.1} parent=1 // pred_check
      _
    $region51: #{custom_model_forward.1} parent=1 // pred_check_branch
      %51 = sbr.rel (0) target = $region53
    $region52: #{custom_model_forward.1} parent=1 // pred_region
      _
    $region53: #{custom_model_forward.1} parent=1 // pred_fallthru
      _
    // Predicated region
    $region54: #{custom_model_forward.1} parent=1 // pred_check
      _
    $region55: #{custom_model_forward.1} parent=1 // pred_check_branch
      %53 = sbr.rel (0) target = $region57
    $region56: #{custom_model_forward.1} parent=1 // pred_region
      _
    $region57: #{custom_model_forward.1} parent=1 // pred_fallthru
      _
    // Predicated region
    $region58: #{custom_model_forward.1} parent=1 // pred_check
      _
    $region59: #{custom_model_forward.1} parent=1 // pred_check_branch
      %55 = sbr.rel (0) target = $region61
    $region60: #{custom_model_forward.1} parent=1 // pred_region
      _
    $region61: #{custom_model_forward.1} parent=1 // pred_fallthru
      _
    // Predicated region
    $region62: #{custom_model_forward.1} parent=1 // pred_check
      _
    $region63: #{custom_model_forward.1} parent=1 // pred_check_branch
      %57 = sbr.rel (0) target = $region65
    $region64: #{custom_model_forward.1} parent=1 // pred_region
      _
    $region65: #{custom_model_forward.1} parent=1 // pred_fallthru
      _
    // Predicated region
    $region66: #{custom_model_forward.1} parent=1 // pred_check
      _
    $region67: #{custom_model_forward.1} parent=1 // pred_check_branch
      %59 = sbr.rel (0) target = $region69
    $region68: #{custom_model_forward.1} parent=1 // pred_region
      _
    $region69: #{custom_model_forward.1} parent=1 // pred_fallthru
      _
    // Predicated region
    $region70: #{custom_model_forward.1} parent=1 // pred_check
      _
    $region71: #{custom_model_forward.1} parent=1 // pred_check_branch
      %61 = sbr.rel (0) target = $region73
    $region72: #{custom_model_forward.1} parent=1 // pred_region
      _
    $region73: #{custom_model_forward.1} parent=1 // pred_fallthru
      _
    // Predicated region
    $region74: #{custom_model_forward.1} parent=1 // pred_check
      _
    $region75: #{custom_model_forward.1} parent=1 // pred_check_branch
      %63 = sbr.rel (0) target = $region77
    $region76: #{custom_model_forward.1} parent=1 // pred_region
      _
    $region77: #{custom_model_forward.1} parent=1 // pred_fallthru
      _
    // Predicated region
    $region78: #{custom_model_forward.1} parent=1 // pred_check
      _
    $region79: #{custom_model_forward.1} parent=1 // pred_check_branch
      %65 = sbr.rel (0) target = $region81
    $region80: #{custom_model_forward.1} parent=1 // pred_region
      _
    $region81: #{custom_model_forward.1} parent=1 // pred_fallthru
      _
    %v67 = vlaneseq
    %v68 = vand.u32 %v67, 127
    %v69 = vld [vmem:[%s0] sm:$0xff]
    %v70 = vld [vmem:[%s0 + $0x8] sm:$0xff]
    %71 = vset.pattern.permute.xlu0 0
    %72 = vperm.xlu0 %71, %v69
    %v73 = vpop.permute.xlu0 %72
    %74 = vset.pattern.permute.xlu0 0
    %75 = vperm.xlu0 %74, %v70
    %v76 = vpop.permute.xlu0 %75
    %vm77 = vcmp.eq.s32.totalorder %v68, %v73
    %vm78 = vcmp.eq.s32.totalorder %v68, %v76
    %v79 = vsel %vm77, 1, 0
    %v80 = vsel %vm78, 1, 0
    %v81 = vcvt.s32.f32 %v79
    %v82 = vcvt.s32.f32 %v80
    %v83 = vld [vmem:[%s2] sm:$0xff]
    %v84 = vld [vmem:[%s2 + $0x8] sm:$0xff]
    %v85 = vld [vmem:[%s2 + $0x10] sm:$0xff]
    %v86 = vld [vmem:[%s2 + $0x18] sm:$0xff]
    %v87 = vld [vmem:[%s2 + $0x20] sm:$0xff]
    %v88 = vld [vmem:[%s2 + $0x28] sm:$0xff]
    %v89 = vld [vmem:[%s2 + $0x30] sm:$0xff]
    %v90 = vld [vmem:[%s2 + $0x38] sm:$0xff]
    %v91 = vld [vmem:[%s2 + $0x40] sm:$0xff]
    %v92 = vld [vmem:[%s2 + $0x48] sm:$0xff]
    %v93 = vld [vmem:[%s2 + $0x50] sm:$0xff]
    %v94 = vld [vmem:[%s2 + $0x58] sm:$0xff]
    %v95 = vld [vmem:[%s2 + $0x60] sm:$0xff]
    %v96 = vld [vmem:[%s2 + $0x68] sm:$0xff]
    %v97 = vld [vmem:[%s2 + $0x70] sm:$0xff]
    %v98 = vld [vmem:[%s2 + $0x78] sm:$0xff]
    %v99 = vld [vmem:[%s3] sm:$0xff]
    %v100 = vld [vmem:[%s3 + $0x8] sm:$0xff]
    %101 = vmatpush.msra.mxu0 %v98
    %102 = vmatpush.msra.mxu0 %v97
    %103 = vmatpush.msra.mxu0 %v96
    %104 = vmatpush.msra.mxu0 %v95
    %105 = vmatpush.msra.mxu0 %v94
    %106 = vmatpush.msra.mxu0 %v93
    %107 = vmatpush.msra.mxu0 %v92
    %108 = vmatpush.msra.mxu0 %v91
    %109 = vmatpush.msra.mxu0 %v90
    %110 = vmatpush.msra.mxu0 %v89
    %111 = vmatpush.msra.mxu0 %v88
    %112 = vmatpush.msra.mxu0 %v87
    %113 = vmatpush.msra.mxu0 %v86
    %114 = vmatpush.msra.mxu0 %v85
    %115 = vmatpush.msra.mxu0 %v84
    %116 = vmatpush.msra.mxu0 %v83
    %117 = vmatmul.f32.gmra.mxu0 %v81
    %v118 = vpop.f32.mrf.mxu0
    %v119 = vadd.f32 %v99, %v118
    %120 = vmatmul.f32.gmra.mxu0 %v82
    %v121 = vpop.f32.mrf.mxu0
    %v122 = vadd.f32 %v100, %v121
    %123 = vdwg.mxu0
    %v124 = vld [vmem:[%s4] sm:$0x1]
    %v125 = vld [vmem:[%s5] sm:$0x1]
    %vm126 = vcmask 261120
    %v127 = vsel %vm126, %v119, 0.0
    %128 = vadd.xlane.f32.xlu0 %v127
    %v129 = vpop.xlane.xlu0 %128
    %v130 = vsel %vm126, %v122, 0.0
    %131 = vadd.xlane.f32.xlu0 %v130
    %v132 = vpop.xlane.xlu0 %131
    %v133 = vrcp.pop 32.0
    %v134 = vmul.f32 32.0, %v133
    %v135 = vsub.f32 1.0, %v134
    %v136 = vmul.f32 %v133, %v135
    %v137 = vadd.f32 %v133, %v136
    %vm138 = vweird.f32 %v133
    %v139 = vsel %vm138, %v133, %v137
    %v140 = vmul.f32 %v129, %v139
    %v141 = vmul.f32 %v132, %v139
    %v142 = vsub.f32 %v119, %v140
    %v143 = vsub.f32 %v122, %v141
    %v144 = vmul.f32 %v142, %v142
    %v145 = vmul.f32 %v143, %v143
    %v146 = vsel %vm126, %v144, 0.0
    %147 = vadd.xlane.f32.xlu0 %v146
    %v148 = vpop.xlane.xlu0 %147
    %v149 = vsel %vm126, %v145, 0.0
    %150 = vadd.xlane.f32.xlu0 %v149
    %v151 = vpop.xlane.xlu0 %150
    %v152 = vmul.f32 %v148, %v139
    %v153 = vmul.f32 %v151, %v139
    %v154 = vadd.f32 %v152, 1e-07
    %v155 = vadd.f32 %v153, 1e-07
    %v156 = vrsqrt.pop %v154
    %v157 = vmul.f32 %v156, %v154
    %v158 = vmul.f32 %v157, %v156
    %v159 = vmul.f32 0.5, %v158
    %v160 = vsub.f32 1.5, %v159
    %v161 = vmul.f32 %v156, %v160
    %vm162 = vweird.f32 %v154
    %vm163 = vweird.f32 %v156
    %vm164 = vmor %vm162, %vm163
    %v165 = vsel %vm164, %v156, %v161
    %v166 = vrsqrt.pop %v155
    %v167 = vmul.f32 %v166, %v155
    %v168 = vmul.f32 %v167, %v166
    %v169 = vmul.f32 0.5, %v168
    %v170 = vsub.f32 1.5, %v169
    %v171 = vmul.f32 %v166, %v170
    %vm172 = vweird.f32 %v155
    %vm173 = vweird.f32 %v166
    %vm174 = vmor %vm172, %vm173
    %v175 = vsel %vm174, %v166, %v171
    %v176 = vmul.f32 %v142, %v165
    %v177 = vmul.f32 %v143, %v175
    %v179 = vperm.slane %v124, 0
    %v181 = vmul.f32 %v176, %v179
    %v182 = vmul.f32 %v177, %v179
    %v184 = vperm.slane %v125, 0
    %v186 = vadd.f32 %v181, %v184
    %v187 = vadd.f32 %v182, %v184
    %v188 = vld [vmem:[%s1] sm:$0x3]
    %v189 = vcvt.s32.f32 %v188
    %v190 = vsub.f32 1.0, %v189
    %v192 = vrot.slane %v190, 1
    %v194 = vmul.f32 %v190, -1e+09
    %v195 = vmul.f32 %v192, -1e+09
    %v196 = vld [vmem:[%s6] sm:$0xf]
    %v197 = vld [vmem:[%s6 + $0x4] sm:$0xf]
    %v198 = vld [vmem:[%s6 + $0x8] sm:$0xf]
    %v199 = vld [vmem:[%s6 + $0xc] sm:$0xf]
    %v200 = vpack.c.bf16 %v187, %v186
    %v201 = vld [vmem:[%s7] sm:$0x1]
    %v203 = vperm.slane %v201, 0
    %v209 = vunpack.c.l.b16 %v196
    %v210 = vunpack.c.l.b16 %v197
    %v211 = vunpack.c.l.b16 %v198
    %v212 = vunpack.c.l.b16 %v199
    %v213 = vpack.c.b16 %v210, %v209
    %v214 = vpack.c.b16 %v212, %v211
    %v218 = vsel %vm126, %v200, 0
    %220 = vmatpush.bf16.msra.mxu0 0
    %221 = vmatpush.bf16.msra.mxu0 0
    %222 = vmatpush.bf16.msra.mxu0 0
    %223 = vmatpush.bf16.msra.mxu0 0
    %224 = vmatpush.bf16.msra.mxu0 0
    %225 = vmatpush.bf16.msra.mxu0 0
    %226 = vmatpush.bf16.msra.mxu0 %v214
    %227 = vmatpush.bf16.msra.mxu0 %v213
    %228 = vmatmul.bf16.gmra.mxu0 %v218
    %v229 = vpop.f32.mrf.mxu0
    %v230 = vadd.f32 %v203, %v229
    %v231 = vpop.f32.mrf.mxu0
    %v232 = vadd.f32 %v203, %v231
    %233 = vdwg.mxu0
    %v234 = vpack.c.bf16 %v230, %v230
    %v235 = vpack.c.bf16 %v232, %v232
    %v238 = vperm.slane %v194, 0
    %v239 = vperm.slane %v195, 0
    %v243 = vunpack.c.l.b16 %v234
    %v244 = vpack.c.b16 %v243, %v243
    %245 = vrot.lane.b32.xlu0 %v244, 96
    %v246 = vpop.permute.xlu0 %245
    %vm247 = vcmask 64512
    %v249 = vsel %vm247, %v234, 0
    %v252 = vsel %vm247, %v246, 0
    %254 = vmatpush.bf16.xpose.msra.mxu0 0
    %255 = vmatpush.bf16.xpose.msra.mxu0 0
    %256 = vmatpush.bf16.xpose.msra.mxu0 0
    %257 = vmatpush.bf16.xpose.msra.mxu0 0
    %258 = vmatpush.bf16.xpose.msra.mxu0 0
    %259 = vmatpush.bf16.xpose.msra.mxu0 0
    %260 = vmatpush.bf16.xpose.msra.mxu0 0
    %261 = vmatpush.bf16.xpose.msra.mxu0 %v252
    %262 = vmatmul.bf16.gmra.mxu0 %v249
    %v263 = vpop.f32.mrf.mxu0
    %v264 = vadd.f32 %v238, %v263
    %v265 = vpop.f32.mrf.mxu0
    %266 = vdwg.mxu0
    %v268 = vunpack.c.l.b16 %v235
    %v269 = vpack.c.b16 %v268, %v268
    %270 = vrot.lane.b32.xlu0 %v269, 96
    %v271 = vpop.permute.xlu0 %270
    %v273 = vsel %vm247, %v235, 0
    %v276 = vsel %vm247, %v271, 0
    %278 = vmatpush.bf16.xpose.msra.mxu0 0
    %279 = vmatpush.bf16.xpose.msra.mxu0 0
    %280 = vmatpush.bf16.xpose.msra.mxu0 0
    %281 = vmatpush.bf16.xpose.msra.mxu0 0
    %282 = vmatpush.bf16.xpose.msra.mxu0 0
    %283 = vmatpush.bf16.xpose.msra.mxu0 0
    %284 = vmatpush.bf16.xpose.msra.mxu0 0
    %285 = vmatpush.bf16.xpose.msra.mxu0 %v276
    %286 = vmatmul.bf16.gmra.mxu0 %v273
    %v287 = vpop.f32.mrf.mxu0
    %v288 = vadd.f32 %v239, %v287
    %v289 = vpop.f32.mrf.mxu0
    %290 = vdwg.mxu0
    %v291 = vsel %vm247, %v264, -inf
    %292 = vmax.xlane.f32.xlu0 %v291
    %v293 = vpop.xlane.xlu0 %292
    %v294 = vsel %vm247, %v288, -inf
    %295 = vmax.xlane.f32.xlu0 %v294
    %v296 = vpop.xlane.xlu0 %295
    %v297 = vsub.f32 %v264, %v293
    %v298 = vsub.f32 %v288, %v296
    %v299 = vmul.f32 %v297, 1.442695
    %v300 = vpow.pop %v299
    %v301 = vmul.f32 %v298, 1.442695
    %v302 = vpow.pop %v301
    %v303 = vsel %vm247, %v300, 0.0
    %304 = vadd.xlane.f32.xlu0 %v303
    %v305 = vpop.xlane.xlu0 %304
    %v306 = vsel %vm247, %v302, 0.0
    %307 = vadd.xlane.f32.xlu0 %v306
    %v308 = vpop.xlane.xlu0 %307
    %v309 = vrcp.pop %v305
    %v310 = vrcp.pop %v308
    %v311 = vmul.f32 %v300, %v309
    %v312 = vmul.f32 %v302, %v310
    %v313 = vpack.c.bf16 %v311, %v311
    %v314 = vpack.c.bf16 %v312, %v312
    %315 = vrot.lane.b32.xlu0 %v244, 64
    %v316 = vpop.permute.xlu0 %315
    %v318 = vsel %vm247, %v313, 0
    %vm320 = vcmask 1043456
    %v322 = vsel %vm320, %v316, 0
    %324 = vmatpush.bf16.msra.mxu0 0
    %325 = vmatpush.bf16.msra.mxu0 0
    %326 = vmatpush.bf16.msra.mxu0 0
    %327 = vmatpush.bf16.msra.mxu0 0
    %328 = vmatpush.bf16.msra.mxu0 0
    %329 = vmatpush.bf16.msra.mxu0 0
    %330 = vmatpush.bf16.msra.mxu0 0
    %331 = vmatpush.bf16.msra.mxu0 %v322
    %332 = vmatmul.bf16.gmra.mxu0 %v318
    %v333 = vpop.f32.mrf.mxu0
    %v334 = vadd.f32 0.0, %v333
    %v335 = vpop.f32.mrf.mxu0
    %336 = vdwg.mxu0
    %337 = vrot.lane.b32.xlu0 %v269, 64
    %v338 = vpop.permute.xlu0 %337
    %v340 = vsel %vm247, %v314, 0
    %v343 = vsel %vm320, %v338, 0
    %345 = vmatpush.bf16.msra.mxu0 0
    %346 = vmatpush.bf16.msra.mxu0 0
    %347 = vmatpush.bf16.msra.mxu0 0
    %348 = vmatpush.bf16.msra.mxu0 0
    %349 = vmatpush.bf16.msra.mxu0 0
    %350 = vmatpush.bf16.msra.mxu0 0
    %351 = vmatpush.bf16.msra.mxu0 0
    %352 = vmatpush.bf16.msra.mxu0 %v343
    %353 = vmatmul.bf16.gmra.mxu0 %v340
    %v354 = vpop.f32.mrf.mxu0
    %v355 = vadd.f32 0.0, %v354
    %v356 = vpop.f32.mrf.mxu0
    %357 = vdwg.mxu0
    %358 = vrot.lane.b32.xlu0 %v244, 120
    %v359 = vpop.permute.xlu0 %358
    %360 = vrot.lane.b32.xlu0 %v244, 88
    %v361 = vpop.permute.xlu0 %360
    %v363 = vsel %vm247, %v359, 0
    %v366 = vsel %vm247, %v361, 0
    %368 = vmatpush.bf16.xpose.msra.mxu0 0
    %369 = vmatpush.bf16.xpose.msra.mxu0 0
    %370 = vmatpush.bf16.xpose.msra.mxu0 0
    %371 = vmatpush.bf16.xpose.msra.mxu0 0
    %372 = vmatpush.bf16.xpose.msra.mxu0 0
    %373 = vmatpush.bf16.xpose.msra.mxu0 0
    %374 = vmatpush.bf16.xpose.msra.mxu0 0
    %375 = vmatpush.bf16.xpose.msra.mxu0 %v366
    %376 = vmatmul.bf16.gmra.mxu0 %v363
    %v377 = vpop.f32.mrf.mxu0
    %v378 = vadd.f32 %v238, %v377
    %v379 = vpop.f32.mrf.mxu0
    %380 = vdwg.mxu0
    %381 = vrot.lane.b32.xlu0 %v269, 120
    %v382 = vpop.permute.xlu0 %381
    %383 = vrot.lane.b32.xlu0 %v269, 88
    %v384 = vpop.permute.xlu0 %383
    %v386 = vsel %vm247, %v382, 0
    %v389 = vsel %vm247, %v384, 0
    %391 = vmatpush.bf16.xpose.msra.mxu0 0
    %392 = vmatpush.bf16.xpose.msra.mxu0 0
    %393 = vmatpush.bf16.xpose.msra.mxu0 0
    %394 = vmatpush.bf16.xpose.msra.mxu0 0
    %395 = vmatpush.bf16.xpose.msra.mxu0 0
    %396 = vmatpush.bf16.xpose.msra.mxu0 0
    %397 = vmatpush.bf16.xpose.msra.mxu0 0
    %398 = vmatpush.bf16.xpose.msra.mxu0 %v389
    %399 = vmatmul.bf16.gmra.mxu0 %v386
    %v400 = vpop.f32.mrf.mxu0
    %v401 = vadd.f32 %v239, %v400
    %v402 = vpop.f32.mrf.mxu0
    %403 = vdwg.mxu0
    %v404 = vsel %vm247, %v378, -inf
    %405 = vmax.xlane.f32.xlu0 %v404
    %v406 = vpop.xlane.xlu0 %405
    %v407 = vsel %vm247, %v401, -inf
    %408 = vmax.xlane.f32.xlu0 %v407
    %v409 = vpop.xlane.xlu0 %408
    %v410 = vsub.f32 %v378, %v406
    %v411 = vsub.f32 %v401, %v409
    %v412 = vmul.f32 %v410, 1.442695
    %v413 = vpow.pop %v412
    %v414 = vmul.f32 %v411, 1.442695
    %v415 = vpow.pop %v414
    %v416 = vsel %vm247, %v413, 0.0
    %417 = vadd.xlane.f32.xlu0 %v416
    %v418 = vpop.xlane.xlu0 %417
    %v419 = vsel %vm247, %v415, 0.0
    %420 = vadd.xlane.f32.xlu0 %v419
    %v421 = vpop.xlane.xlu0 %420
    %v422 = vrcp.pop %v418
    %v423 = vrcp.pop %v421
    %v424 = vmul.f32 %v413, %v422
    %v425 = vmul.f32 %v415, %v423
    %v426 = vpack.c.bf16 %v424, %v424
    %v427 = vpack.c.bf16 %v425, %v425
    %428 = vrot.lane.b32.xlu0 %v244, 56
    %v429 = vpop.permute.xlu0 %428
    %v431 = vsel %vm247, %v426, 0
    %v434 = vsel %vm320, %v429, 0
    %436 = vmatpush.bf16.msra.mxu0 0
    %437 = vmatpush.bf16.msra.mxu0 0
    %438 = vmatpush.bf16.msra.mxu0 0
    %439 = vmatpush.bf16.msra.mxu0 0
    %440 = vmatpush.bf16.msra.mxu0 0
    %441 = vmatpush.bf16.msra.mxu0 0
    %442 = vmatpush.bf16.msra.mxu0 0
    %443 = vmatpush.bf16.msra.mxu0 %v434
    %444 = vmatmul.bf16.gmra.mxu0 %v431
    %v445 = vpop.f32.mrf.mxu0
    %v446 = vadd.f32 0.0, %v445
    %v447 = vpop.f32.mrf.mxu0
    %448 = vdwg.mxu0
    %449 = vrot.lane.b32.xlu0 %v269, 56
    %v450 = vpop.permute.xlu0 %449
    %v452 = vsel %vm247, %v427, 0
    %v455 = vsel %vm320, %v450, 0
    %457 = vmatpush.bf16.msra.mxu0 0
    %458 = vmatpush.bf16.msra.mxu0 0
    %459 = vmatpush.bf16.msra.mxu0 0
    %460 = vmatpush.bf16.msra.mxu0 0
    %461 = vmatpush.bf16.msra.mxu0 0
    %462 = vmatpush.bf16.msra.mxu0 0
    %463 = vmatpush.bf16.msra.mxu0 0
    %464 = vmatpush.bf16.msra.mxu0 %v455
    %465 = vmatmul.bf16.gmra.mxu0 %v452
    %v466 = vpop.f32.mrf.mxu0
    %v467 = vadd.f32 0.0, %v466
    %v468 = vpop.f32.mrf.mxu0
    %469 = vdwg.mxu0
    %470 = vrot.lane.b32.xlu0 %v244, 112
    %v471 = vpop.permute.xlu0 %470
    %472 = vrot.lane.b32.xlu0 %v244, 80
    %v473 = vpop.permute.xlu0 %472
    %v475 = vsel %vm247, %v471, 0
    %v478 = vsel %vm247, %v473, 0
    %480 = vmatpush.bf16.xpose.msra.mxu0 0
    %481 = vmatpush.bf16.xpose.msra.mxu0 0
    %482 = vmatpush.bf16.xpose.msra.mxu0 0
    %483 = vmatpush.bf16.xpose.msra.mxu0 0
    %484 = vmatpush.bf16.xpose.msra.mxu0 0
    %485 = vmatpush.bf16.xpose.msra.mxu0 0
    %486 = vmatpush.bf16.xpose.msra.mxu0 0
    %487 = vmatpush.bf16.xpose.msra.mxu0 %v478
    %488 = vmatmul.bf16.gmra.mxu0 %v475
    %v489 = vpop.f32.mrf.mxu0
    %v490 = vadd.f32 %v238, %v489
    %v491 = vpop.f32.mrf.mxu0
    %492 = vdwg.mxu0
    %493 = vrot.lane.b32.xlu0 %v269, 112
    %v494 = vpop.permute.xlu0 %493
    %495 = vrot.lane.b32.xlu0 %v269, 80
    %v496 = vpop.permute.xlu0 %495
    %v498 = vsel %vm247, %v494, 0
    %v501 = vsel %vm247, %v496, 0
    %503 = vmatpush.bf16.xpose.msra.mxu0 0
    %504 = vmatpush.bf16.xpose.msra.mxu0 0
    %505 = vmatpush.bf16.xpose.msra.mxu0 0
    %506 = vmatpush.bf16.xpose.msra.mxu0 0
    %507 = vmatpush.bf16.xpose.msra.mxu0 0
    %508 = vmatpush.bf16.xpose.msra.mxu0 0
    %509 = vmatpush.bf16.xpose.msra.mxu0 0
    %510 = vmatpush.bf16.xpose.msra.mxu0 %v501
    %511 = vmatmul.bf16.gmra.mxu0 %v498
    %v512 = vpop.f32.mrf.mxu0
    %v513 = vadd.f32 %v239, %v512
    %v514 = vpop.f32.mrf.mxu0
    %515 = vdwg.mxu0
    %v516 = vsel %vm247, %v490, -inf
    %517 = vmax.xlane.f32.xlu0 %v516
    %v518 = vpop.xlane.xlu0 %517
    %v519 = vsel %vm247, %v513, -inf
    %520 = vmax.xlane.f32.xlu0 %v519
    %v521 = vpop.xlane.xlu0 %520
    %v522 = vsub.f32 %v490, %v518
    %v523 = vsub.f32 %v513, %v521
    %v524 = vmul.f32 %v522, 1.442695
    %v525 = vpow.pop %v524
    %v526 = vmul.f32 %v523, 1.442695
    %v527 = vpow.pop %v526
    %v528 = vsel %vm247, %v525, 0.0
    %529 = vadd.xlane.f32.xlu0 %v528
    %v530 = vpop.xlane.xlu0 %529
    %v531 = vsel %vm247, %v527, 0.0
    %532 = vadd.xlane.f32.xlu0 %v531
    %v533 = vpop.xlane.xlu0 %532
    %v534 = vrcp.pop %v530
    %v535 = vrcp.pop %v533
    %v536 = vmul.f32 %v525, %v534
    %v537 = vmul.f32 %v527, %v535
    %v538 = vpack.c.bf16 %v536, %v536
    %v539 = vpack.c.bf16 %v537, %v537
    %540 = vrot.lane.b32.xlu0 %v244, 48
    %v541 = vpop.permute.xlu0 %540
    %v543 = vsel %vm247, %v538, 0
    %v546 = vsel %vm320, %v541, 0
    %548 = vmatpush.bf16.msra.mxu0 0
    %549 = vmatpush.bf16.msra.mxu0 0
    %550 = vmatpush.bf16.msra.mxu0 0
    %551 = vmatpush.bf16.msra.mxu0 0
    %552 = vmatpush.bf16.msra.mxu0 0
    %553 = vmatpush.bf16.msra.mxu0 0
    %554 = vmatpush.bf16.msra.mxu0 0
    %555 = vmatpush.bf16.msra.mxu0 %v546
    %556 = vmatmul.bf16.gmra.mxu0 %v543
    %v557 = vpop.f32.mrf.mxu0
    %v558 = vadd.f32 0.0, %v557
    %v559 = vpop.f32.mrf.mxu0
    %560 = vdwg.mxu0
    %561 = vrot.lane.b32.xlu0 %v269, 48
    %v562 = vpop.permute.xlu0 %561
    %v564 = vsel %vm247, %v539, 0
    %v567 = vsel %vm320, %v562, 0
    %569 = vmatpush.bf16.msra.mxu0 0
    %570 = vmatpush.bf16.msra.mxu0 0
    %571 = vmatpush.bf16.msra.mxu0 0
    %572 = vmatpush.bf16.msra.mxu0 0
    %573 = vmatpush.bf16.msra.mxu0 0
    %574 = vmatpush.bf16.msra.mxu0 0
    %575 = vmatpush.bf16.msra.mxu0 0
    %576 = vmatpush.bf16.msra.mxu0 %v567
    %577 = vmatmul.bf16.gmra.mxu0 %v564
    %v578 = vpop.f32.mrf.mxu0
    %v579 = vadd.f32 0.0, %v578
    %v580 = vpop.f32.mrf.mxu0
    %581 = vdwg.mxu0
    %582 = vrot.lane.b32.xlu0 %v244, 104
    %v583 = vpop.permute.xlu0 %582
    %584 = vrot.lane.b32.xlu0 %v244, 72
    %v585 = vpop.permute.xlu0 %584
    %v587 = vsel %vm247, %v583, 0
    %v590 = vsel %vm247, %v585, 0
    %592 = vmatpush.bf16.xpose.msra.mxu0 0
    %593 = vmatpush.bf16.xpose.msra.mxu0 0
    %594 = vmatpush.bf16.xpose.msra.mxu0 0
    %595 = vmatpush.bf16.xpose.msra.mxu0 0
    %596 = vmatpush.bf16.xpose.msra.mxu0 0
    %597 = vmatpush.bf16.xpose.msra.mxu0 0
    %598 = vmatpush.bf16.xpose.msra.mxu0 0
    %599 = vmatpush.bf16.xpose.msra.mxu0 %v590
    %600 = vmatmul.bf16.gmra.mxu0 %v587
    %v601 = vpop.f32.mrf.mxu0
    %v602 = vadd.f32 %v238, %v601
    %v603 = vpop.f32.mrf.mxu0
    %604 = vdwg.mxu0
    %605 = vrot.lane.b32.xlu0 %v269, 104
    %v606 = vpop.permute.xlu0 %605
    %607 = vrot.lane.b32.xlu0 %v269, 72
    %v608 = vpop.permute.xlu0 %607
    %v610 = vsel %vm247, %v606, 0
    %v613 = vsel %vm247, %v608, 0
    %615 = vmatpush.bf16.xpose.msra.mxu0 0
    %616 = vmatpush.bf16.xpose.msra.mxu0 0
    %617 = vmatpush.bf16.xpose.msra.mxu0 0
    %618 = vmatpush.bf16.xpose.msra.mxu0 0
    %619 = vmatpush.bf16.xpose.msra.mxu0 0
    %620 = vmatpush.bf16.xpose.msra.mxu0 0
    %621 = vmatpush.bf16.xpose.msra.mxu0 0
    %622 = vmatpush.bf16.xpose.msra.mxu0 %v613
    %623 = vmatmul.bf16.gmra.mxu0 %v610
    %v624 = vpop.f32.mrf.mxu0
    %v625 = vadd.f32 %v239, %v624
    %v626 = vpop.f32.mrf.mxu0
    %627 = vdwg.mxu0
    %v628 = vsel %vm247, %v602, -inf
    %629 = vmax.xlane.f32.xlu0 %v628
    %v630 = vpop.xlane.xlu0 %629
    %v631 = vsel %vm247, %v625, -inf
    %632 = vmax.xlane.f32.xlu0 %v631
    %v633 = vpop.xlane.xlu0 %632
    %v634 = vsub.f32 %v602, %v630
    %v635 = vsub.f32 %v625, %v633
    %v636 = vmul.f32 %v634, 1.442695
    %v637 = vpow.pop %v636
    %v638 = vmul.f32 %v635, 1.442695
    %v639 = vpow.pop %v638
    %v640 = vsel %vm247, %v637, 0.0
    %641 = vadd.xlane.f32.xlu0 %v640
    %v642 = vpop.xlane.xlu0 %641
    %v643 = vsel %vm247, %v639, 0.0
    %644 = vadd.xlane.f32.xlu0 %v643
    %v645 = vpop.xlane.xlu0 %644
    %v646 = vrcp.pop %v642
    %v647 = vrcp.pop %v645
    %v648 = vmul.f32 %v637, %v646
    %v649 = vmul.f32 %v639, %v647
    %v650 = vpack.c.bf16 %v648, %v648
    %v651 = vpack.c.bf16 %v649, %v649
    %652 = vrot.lane.b32.xlu0 %v244, 40
    %v653 = vpop.permute.xlu0 %652
    %v655 = vsel %vm247, %v650, 0
    %v658 = vsel %vm320, %v653, 0
    %660 = vmatpush.bf16.msra.mxu0 0
    %661 = vmatpush.bf16.msra.mxu0 0
    %662 = vmatpush.bf16.msra.mxu0 0
    %663 = vmatpush.bf16.msra.mxu0 0
    %664 = vmatpush.bf16.msra.mxu0 0
    %665 = vmatpush.bf16.msra.mxu0 0
    %666 = vmatpush.bf16.msra.mxu0 0
    %667 = vmatpush.bf16.msra.mxu0 %v658
    %668 = vmatmul.bf16.gmra.mxu0 %v655
    %v669 = vpop.f32.mrf.mxu0
    %v670 = vadd.f32 0.0, %v669
    %v671 = vpop.f32.mrf.mxu0
    %672 = vdwg.mxu0
    %673 = vrot.lane.b32.xlu0 %v269, 40
    %v674 = vpop.permute.xlu0 %673
    %v676 = vsel %vm247, %v651, 0
    %v679 = vsel %vm320, %v674, 0
    %681 = vmatpush.bf16.msra.mxu0 0
    %682 = vmatpush.bf16.msra.mxu0 0
    %683 = vmatpush.bf16.msra.mxu0 0
    %684 = vmatpush.bf16.msra.mxu0 0
    %685 = vmatpush.bf16.msra.mxu0 0
    %686 = vmatpush.bf16.msra.mxu0 0
    %687 = vmatpush.bf16.msra.mxu0 0
    %688 = vmatpush.bf16.msra.mxu0 %v679
    %689 = vmatmul.bf16.gmra.mxu0 %v676
    %v690 = vpop.f32.mrf.mxu0
    %v691 = vadd.f32 0.0, %v690
    %v692 = vpop.f32.mrf.mxu0
    %693 = vdwg.mxu0
    %696 = vrot.lane.b32.xlu0 %v446, 8
    %v697 = vpop.permute.xlu0 %696
    %698 = vrot.lane.b32.xlu0 %v467, 8
    %v699 = vpop.permute.xlu0 %698
    %704 = vrot.lane.b32.xlu0 %v558, 16
    %v705 = vpop.permute.xlu0 %704
    %706 = vrot.lane.b32.xlu0 %v579, 16
    %v707 = vpop.permute.xlu0 %706
    %712 = vrot.lane.b32.xlu0 %v670, 24
    %v713 = vpop.permute.xlu0 %712
    %714 = vrot.lane.b32.xlu0 %v691, 24
    %v715 = vpop.permute.xlu0 %714
    %v718 = vsel %vm247, %v334, %v697
    %v719 = vsel %vm247, %v355, %v699
    %vm720 = vcmask 130048
    %v721 = vsel %vm720, %v718, %v705
    %v722 = vsel %vm720, %v719, %v707
    %vm723 = vcmask 195584
    %v724 = vsel %vm723, %v721, %v713
    %v725 = vsel %vm723, %v722, %v715
    %v726 = vld [vmem:[%s8] sm:$0xf]
    %v727 = vld [vmem:[%s8 + $0x4] sm:$0xf]
    %v728 = vld [vmem:[%s8 + $0x8] sm:$0xf]
    %v729 = vld [vmem:[%s8 + $0xc] sm:$0xf]
    %v730 = vpack.c.bf16 %v725, %v724
    %v731 = vld [vmem:[%s9] sm:$0x1]
    %v733 = vperm.slane %v731, 0
    %v739 = vunpack.c.l.b16 %v726
    %v740 = vunpack.c.l.b16 %v727
    %v741 = vunpack.c.l.b16 %v728
    %v742 = vunpack.c.l.b16 %v729
    %v743 = vpack.c.b16 %v740, %v739
    %v744 = vpack.c.b16 %v742, %v741
    %v748 = vsel %vm126, %v730, 0
    %750 = vmatpush.bf16.msra.mxu0 0
    %751 = vmatpush.bf16.msra.mxu0 0
    %752 = vmatpush.bf16.msra.mxu0 0
    %753 = vmatpush.bf16.msra.mxu0 0
    %754 = vmatpush.bf16.msra.mxu0 0
    %755 = vmatpush.bf16.msra.mxu0 0
    %756 = vmatpush.bf16.msra.mxu0 %v744
    %757 = vmatpush.bf16.msra.mxu0 %v743
    %758 = vmatmul.bf16.gmra.mxu0 %v748
    %v759 = vpop.f32.mrf.mxu0
    %v760 = vadd.f32 %v733, %v759
    %v761 = vpop.f32.mrf.mxu0
    %v762 = vadd.f32 %v733, %v761
    %763 = vdwg.mxu0
    %v764 = vadd.f32 %v186, %v760
    %v765 = vadd.f32 %v187, %v762
    %v766 = vld [vmem:[%s10] sm:$0x1]
    %v767 = vld [vmem:[%s11] sm:$0x1]
    %v768 = vsel %vm126, %v764, 0.0
    %769 = vadd.xlane.f32.xlu0 %v768
    %v770 = vpop.xlane.xlu0 %769
    %v771 = vsel %vm126, %v765, 0.0
    %772 = vadd.xlane.f32.xlu0 %v771
    %v773 = vpop.xlane.xlu0 %772
    %v774 = vmul.f32 %v770, %v139
    %v775 = vmul.f32 %v773, %v139
    %v776 = vsub.f32 %v764, %v774
    %v777 = vsub.f32 %v765, %v775
    %v778 = vmul.f32 %v776, %v776
    %v779 = vmul.f32 %v777, %v777
    %v780 = vsel %vm126, %v778, 0.0
    %781 = vadd.xlane.f32.xlu0 %v780
    %v782 = vpop.xlane.xlu0 %781
    %v783 = vsel %vm126, %v779, 0.0
    %784 = vadd.xlane.f32.xlu0 %v783
    %v785 = vpop.xlane.xlu0 %784
    %v786 = vmul.f32 %v782, %v139
    %v787 = vmul.f32 %v785, %v139
    %v788 = vadd.f32 %v786, 1e-07
    %v789 = vadd.f32 %v787, 1e-07
    %v790 = vrsqrt.pop %v788
    %v791 = vmul.f32 %v790, %v788
    %v792 = vmul.f32 %v791, %v790
    %v793 = vmul.f32 0.5, %v792
    %v794 = vsub.f32 1.5, %v793
    %v795 = vmul.f32 %v790, %v794
    %vm796 = vweird.f32 %v788
    %vm797 = vweird.f32 %v790
    %vm798 = vmor %vm796, %vm797
    %v799 = vsel %vm798, %v790, %v795
    %v800 = vrsqrt.pop %v789
    %v801 = vmul.f32 %v800, %v789
    %v802 = vmul.f32 %v801, %v800
    %v803 = vmul.f32 0.5, %v802
    %v804 = vsub.f32 1.5, %v803
    %v805 = vmul.f32 %v800, %v804
    %vm806 = vweird.f32 %v789
    %vm807 = vweird.f32 %v800
    %vm808 = vmor %vm806, %vm807
    %v809 = vsel %vm808, %v800, %v805
    %v810 = vmul.f32 %v776, %v799
    %v811 = vmul.f32 %v777, %v809
    %v813 = vperm.slane %v766, 0
    %v815 = vmul.f32 %v810, %v813
    %v816 = vmul.f32 %v811, %v813
    %v818 = vperm.slane %v767, 0
    %v820 = vadd.f32 %v815, %v818
    %v821 = vadd.f32 %v816, %v818
    %v822 = vld [vmem:[%s12] sm:$0xf]
    %v823 = vld [vmem:[%s12 + $0x4] sm:$0xf]
    %v824 = vld [vmem:[%s12 + $0x8] sm:$0xf]
    %v825 = vld [vmem:[%s12 + $0xc] sm:$0xf]
    %v826 = vpack.c.bf16 %v821, %v820
    %v827 = vld [vmem:[%s13] sm:$0x1]
    %v829 = vperm.slane %v827, 0
    %v835 = vunpack.c.l.b16 %v822
    %v836 = vunpack.c.l.b16 %v823
    %v837 = vunpack.c.l.b16 %v824
    %v838 = vunpack.c.l.b16 %v825
    %v839 = vpack.c.b16 %v836, %v835
    %v840 = vpack.c.b16 %v838, %v837
    %v844 = vsel %vm126, %v826, 0
    %846 = vmatpush.bf16.msra.mxu0 0
    %847 = vmatpush.bf16.msra.mxu0 0
    %848 = vmatpush.bf16.msra.mxu0 0
    %849 = vmatpush.bf16.msra.mxu0 0
    %850 = vmatpush.bf16.msra.mxu0 0
    %851 = vmatpush.bf16.msra.mxu0 0
    %852 = vmatpush.bf16.msra.mxu0 %v840
    %853 = vmatpush.bf16.msra.mxu0 %v839
    %854 = vmatmul.bf16.gmra.mxu0 %v844
    %v855 = vpop.f32.mrf.mxu0
    %v856 = vadd.f32 %v829, %v855
    %v857 = vpop.f32.mrf.mxu0
    %v858 = vadd.f32 %v829, %v857
    %859 = vdwg.mxu0
    %v860 = vmul.f32 %v856, %v856
    %v861 = vmul.f32 %v858, %v858
    %v862 = vmul.f32 %v856, %v860
    %v863 = vmul.f32 %v858, %v861
    %v864 = vmul.f32 %v862, 0.044715
    %v865 = vmul.f32 %v863, 0.044715
    %v866 = vadd.f32 %v856, %v864
    %v867 = vadd.f32 %v858, %v865
    %v868 = vmul.f32 %v866, 0.7978846
    %v869 = vmul.f32 %v867, 0.7978846
    %v870 = vtanh.pop %v868
    %v871 = vtanh.pop %v869
    %v872 = vadd.f32 %v870, 1.0
    %v873 = vadd.f32 %v871, 1.0
    %v874 = vmul.f32 %v872, 0.5
    %v875 = vmul.f32 %v873, 0.5
    %v876 = vmul.f32 %v856, %v874
    %v877 = vmul.f32 %v858, %v875
    %v878 = vld [vmem:[%s14] sm:$0xf]
    %v879 = vld [vmem:[%s14 + $0x4] sm:$0xf]
    %v880 = vld [vmem:[%s14 + $0x8] sm:$0xf]
    %v881 = vld [vmem:[%s14 + $0xc] sm:$0xf]
    %v882 = vld [vmem:[%s14 + $0x10] sm:$0xf]
    %v883 = vld [vmem:[%s14 + $0x14] sm:$0xf]
    %v884 = vld [vmem:[%s14 + $0x18] sm:$0xf]
    %v885 = vld [vmem:[%s14 + $0x1c] sm:$0xf]
    %v886 = vpack.c.bf16 %v877, %v876
    %v887 = vld [vmem:[%s15] sm:$0x1]
    %v889 = vperm.slane %v887, 0
    %v899 = vunpack.c.l.b16 %v878
    %v900 = vunpack.c.l.b16 %v879
    %v901 = vunpack.c.l.b16 %v880
    %v902 = vunpack.c.l.b16 %v881
    %v903 = vunpack.c.l.b16 %v882
    %v904 = vunpack.c.l.b16 %v883
    %v905 = vunpack.c.l.b16 %v884
    %v906 = vunpack.c.l.b16 %v885
    %v907 = vpack.c.b16 %v900, %v899
    %v908 = vpack.c.b16 %v902, %v901
    %v909 = vpack.c.b16 %v904, %v903
    %v910 = vpack.c.b16 %v906, %v905
    %vm915 = vcmask 523264
    %v917 = vsel %vm915, %v886, 0
    %919 = vmatpush.bf16.msra.mxu0 0
    %920 = vmatpush.bf16.msra.mxu0 0
    %921 = vmatpush.bf16.msra.mxu0 0
    %922 = vmatpush.bf16.msra.mxu0 0
    %923 = vmatpush.bf16.msra.mxu0 %v910
    %924 = vmatpush.bf16.msra.mxu0 %v909
    %925 = vmatpush.bf16.msra.mxu0 %v908
    %926 = vmatpush.bf16.msra.mxu0 %v907
    %927 = vmatmul.bf16.gmra.mxu0 %v917
    %v928 = vpop.f32.mrf.mxu0
    %v929 = vadd.f32 %v889, %v928
    %v930 = vpop.f32.mrf.mxu0
    %v931 = vadd.f32 %v889, %v930
    %932 = vdwg.mxu0
    %v933 = vadd.f32 %v820, %v929
    %v934 = vadd.f32 %v821, %v931
    %v935 = vld [vmem:[%s16] sm:$0x1]
    %v936 = vld [vmem:[%s17] sm:$0x1]
    %v937 = vsel %vm126, %v933, 0.0
    %938 = vadd.xlane.f32.xlu0 %v937
    %v939 = vpop.xlane.xlu0 %938
    %v940 = vsel %vm126, %v934, 0.0
    %941 = vadd.xlane.f32.xlu0 %v940
    %v942 = vpop.xlane.xlu0 %941
    %v943 = vmul.f32 %v939, %v139
    %v944 = vmul.f32 %v942, %v139
    %v945 = vsub.f32 %v933, %v943
    %v946 = vsub.f32 %v934, %v944
    %v947 = vmul.f32 %v945, %v945
    %v948 = vmul.f32 %v946, %v946
    %v949 = vsel %vm126, %v947, 0.0
    %950 = vadd.xlane.f32.xlu0 %v949
    %v951 = vpop.xlane.xlu0 %950
    %v952 = vsel %vm126, %v948, 0.0
    %953 = vadd.xlane.f32.xlu0 %v952
    %v954 = vpop.xlane.xlu0 %953
    %v955 = vmul.f32 %v951, %v139
    %v956 = vmul.f32 %v954, %v139
    %v957 = vadd.f32 %v955, 1e-07
    %v958 = vadd.f32 %v956, 1e-07
    %v959 = vrsqrt.pop %v957
    %v960 = vmul.f32 %v959, %v957
    %v961 = vmul.f32 %v960, %v959
    %v962 = vmul.f32 0.5, %v961
    %v963 = vsub.f32 1.5, %v962
    %v964 = vmul.f32 %v959, %v963
    %vm965 = vweird.f32 %v957
    %vm966 = vweird.f32 %v959
    %vm967 = vmor %vm965, %vm966
    %v968 = vsel %vm967, %v959, %v964
    %v969 = vrsqrt.pop %v958
    %v970 = vmul.f32 %v969, %v958
    %v971 = vmul.f32 %v970, %v969
    %v972 = vmul.f32 0.5, %v971
    %v973 = vsub.f32 1.5, %v972
    %v974 = vmul.f32 %v969, %v973
    %vm975 = vweird.f32 %v958
    %vm976 = vweird.f32 %v969
    %vm977 = vmor %vm975, %vm976
    %v978 = vsel %vm977, %v969, %v974
    %v979 = vmul.f32 %v945, %v968
    %v980 = vmul.f32 %v946, %v978
    %v982 = vperm.slane %v935, 0
    %v984 = vmul.f32 %v979, %v982
    %v985 = vmul.f32 %v980, %v982
    %v987 = vperm.slane %v936, 0
    %v989 = vadd.f32 %v984, %v987
    %v990 = vadd.f32 %v985, %v987
    %s991 = scalar_lea.vmem %s6, 16
    %v992 = vld [vmem:[%s991] sm:$0xf]
    %v993 = vld [vmem:[%s991 + $0x4] sm:$0xf]
    %v994 = vld [vmem:[%s991 + $0x8] sm:$0xf]
    %v995 = vld [vmem:[%s991 + $0xc] sm:$0xf]
    %v996 = vpack.c.bf16 %v990, %v989
    %s997 = scalar_lea.vmem %s7, 1
    %v998 = vld [vmem:[%s997] sm:$0x1]
    %v1000 = vperm.slane %v998, 0
    %v1006 = vunpack.c.l.b16 %v992
    %v1007 = vunpack.c.l.b16 %v993
    %v1008 = vunpack.c.l.b16 %v994
    %v1009 = vunpack.c.l.b16 %v995
    %v1010 = vpack.c.b16 %v1007, %v1006
    %v1011 = vpack.c.b16 %v1009, %v1008
    %v1015 = vsel %vm126, %v996, 0
    %1017 = vmatpush.bf16.msra.mxu0 0
    %1018 = vmatpush.bf16.msra.mxu0 0
    %1019 = vmatpush.bf16.msra.mxu0 0
    %1020 = vmatpush.bf16.msra.mxu0 0
    %1021 = vmatpush.bf16.msra.mxu0 0
    %1022 = vmatpush.bf16.msra.mxu0 0
    %1023 = vmatpush.bf16.msra.mxu0 %v1011
    %1024 = vmatpush.bf16.msra.mxu0 %v1010
    %1025 = vmatmul.bf16.gmra.mxu0 %v1015
    %v1026 = vpop.f32.mrf.mxu0
    %v1027 = vadd.f32 %v1000, %v1026
    %v1028 = vpop.f32.mrf.mxu0
    %v1029 = vadd.f32 %v1000, %v1028
    %1030 = vdwg.mxu0
    %v1031 = vpack.c.bf16 %v1027, %v1027
    %v1032 = vpack.c.bf16 %v1029, %v1029
    %v1034 = vunpack.c.l.b16 %v1031
    %v1035 = vpack.c.b16 %v1034, %v1034
    %1036 = vrot.lane.b32.xlu0 %v1035, 96
    %v1037 = vpop.permute.xlu0 %1036
    %v1039 = vsel %vm247, %v1031, 0
    %v1042 = vsel %vm247, %v1037, 0
    %1044 = vmatpush.bf16.xpose.msra.mxu0 0
    %1045 = vmatpush.bf16.xpose.msra.mxu0 0
    %1046 = vmatpush.bf16.xpose.msra.mxu0 0
    %1047 = vmatpush.bf16.xpose.msra.mxu0 0
    %1048 = vmatpush.bf16.xpose.msra.mxu0 0
    %1049 = vmatpush.bf16.xpose.msra.mxu0 0
    %1050 = vmatpush.bf16.xpose.msra.mxu0 0
    %1051 = vmatpush.bf16.xpose.msra.mxu0 %v1042
    %1052 = vmatmul.bf16.gmra.mxu0 %v1039
    %v1053 = vpop.f32.mrf.mxu0
    %v1054 = vadd.f32 %v238, %v1053
    %v1055 = vpop.f32.mrf.mxu0
    %1056 = vdwg.mxu0
    %v1058 = vunpack.c.l.b16 %v1032
    %v1059 = vpack.c.b16 %v1058, %v1058
    %1060 = vrot.lane.b32.xlu0 %v1059, 96
    %v1061 = vpop.permute.xlu0 %1060
    %v1063 = vsel %vm247, %v1032, 0
    %v1066 = vsel %vm247, %v1061, 0
    %1068 = vmatpush.bf16.xpose.msra.mxu0 0
    %1069 = vmatpush.bf16.xpose.msra.mxu0 0
    %1070 = vmatpush.bf16.xpose.msra.mxu0 0
    %1071 = vmatpush.bf16.xpose.msra.mxu0 0
    %1072 = vmatpush.bf16.xpose.msra.mxu0 0
    %1073 = vmatpush.bf16.xpose.msra.mxu0 0
    %1074 = vmatpush.bf16.xpose.msra.mxu0 0
    %1075 = vmatpush.bf16.xpose.msra.mxu0 %v1066
    %1076 = vmatmul.bf16.gmra.mxu0 %v1063
    %v1077 = vpop.f32.mrf.mxu0
    %v1078 = vadd.f32 %v239, %v1077
    %v1079 = vpop.f32.mrf.mxu0
    %1080 = vdwg.mxu0
    %v1081 = vsel %vm247, %v1054, -inf
    %1082 = vmax.xlane.f32.xlu0 %v1081
    %v1083 = vpop.xlane.xlu0 %1082
    %v1084 = vsel %vm247, %v1078, -inf
    %1085 = vmax.xlane.f32.xlu0 %v1084
    %v1086 = vpop.xlane.xlu0 %1085
    %v1087 = vsub.f32 %v1054, %v1083
    %v1088 = vsub.f32 %v1078, %v1086
    %v1089 = vmul.f32 %v1087, 1.442695
    %v1090 = vpow.pop %v1089
    %v1091 = vmul.f32 %v1088, 1.442695
    %v1092 = vpow.pop %v1091
    %v1093 = vsel %vm247, %v1090, 0.0
    %1094 = vadd.xlane.f32.xlu0 %v1093
    %v1095 = vpop.xlane.xlu0 %1094
    %v1096 = vsel %vm247, %v1092, 0.0
    %1097 = vadd.xlane.f32.xlu0 %v1096
    %v1098 = vpop.xlane.xlu0 %1097
    %v1099 = vrcp.pop %v1095
    %v1100 = vrcp.pop %v1098
    %v1101 = vmul.f32 %v1090, %v1099
    %v1102 = vmul.f32 %v1092, %v1100
    %v1103 = vpack.c.bf16 %v1101, %v1101
    %v1104 = vpack.c.bf16 %v1102, %v1102
    %1105 = vrot.lane.b32.xlu0 %v1035, 64
    %v1106 = vpop.permute.xlu0 %1105
    %v1108 = vsel %vm247, %v1103, 0
    %v1111 = vsel %vm320, %v1106, 0
    %1113 = vmatpush.bf16.msra.mxu0 0
    %1114 = vmatpush.bf16.msra.mxu0 0
    %1115 = vmatpush.bf16.msra.mxu0 0
    %1116 = vmatpush.bf16.msra.mxu0 0
    %1117 = vmatpush.bf16.msra.mxu0 0
    %1118 = vmatpush.bf16.msra.mxu0 0
    %1119 = vmatpush.bf16.msra.mxu0 0
    %1120 = vmatpush.bf16.msra.mxu0 %v1111
    %1121 = vmatmul.bf16.gmra.mxu0 %v1108
    %v1122 = vpop.f32.mrf.mxu0
    %v1123 = vadd.f32 0.0, %v1122
    %v1124 = vpop.f32.mrf.mxu0
    %1125 = vdwg.mxu0
    %1126 = vrot.lane.b32.xlu0 %v1059, 64
    %v1127 = vpop.permute.xlu0 %1126
    %v1129 = vsel %vm247, %v1104, 0
    %v1132 = vsel %vm320, %v1127, 0
    %1134 = vmatpush.bf16.msra.mxu0 0
    %1135 = vmatpush.bf16.msra.mxu0 0
    %1136 = vmatpush.bf16.msra.mxu0 0
    %1137 = vmatpush.bf16.msra.mxu0 0
    %1138 = vmatpush.bf16.msra.mxu0 0
    %1139 = vmatpush.bf16.msra.mxu0 0
    %1140 = vmatpush.bf16.msra.mxu0 0
    %1141 = vmatpush.bf16.msra.mxu0 %v1132
    %1142 = vmatmul.bf16.gmra.mxu0 %v1129
    %v1143 = vpop.f32.mrf.mxu0
    %v1144 = vadd.f32 0.0, %v1143
    %v1145 = vpop.f32.mrf.mxu0
    %1146 = vdwg.mxu0
    %1147 = vrot.lane.b32.xlu0 %v1035, 120
    %v1148 = vpop.permute.xlu0 %1147
    %1149 = vrot.lane.b32.xlu0 %v1035, 88
    %v1150 = vpop.permute.xlu0 %1149
    %v1152 = vsel %vm247, %v1148, 0
    %v1155 = vsel %vm247, %v1150, 0
    %1157 = vmatpush.bf16.xpose.msra.mxu0 0
    %1158 = vmatpush.bf16.xpose.msra.mxu0 0
    %1159 = vmatpush.bf16.xpose.msra.mxu0 0
    %1160 = vmatpush.bf16.xpose.msra.mxu0 0
    %1161 = vmatpush.bf16.xpose.msra.mxu0 0
    %1162 = vmatpush.bf16.xpose.msra.mxu0 0
    %1163 = vmatpush.bf16.xpose.msra.mxu0 0
    %1164 = vmatpush.bf16.xpose.msra.mxu0 %v1155
    %1165 = vmatmul.bf16.gmra.mxu0 %v1152
    %v1166 = vpop.f32.mrf.mxu0
    %v1167 = vadd.f32 %v238, %v1166
    %v1168 = vpop.f32.mrf.mxu0
    %1169 = vdwg.mxu0
    %1170 = vrot.lane.b32.xlu0 %v1059, 120
    %v1171 = vpop.permute.xlu0 %1170
    %1172 = vrot.lane.b32.xlu0 %v1059, 88
    %v1173 = vpop.permute.xlu0 %1172
    %v1175 = vsel %vm247, %v1171, 0
    %v1178 = vsel %vm247, %v1173, 0
    %1180 = vmatpush.bf16.xpose.msra.mxu0 0
    %1181 = vmatpush.bf16.xpose.msra.mxu0 0
    %1182 = vmatpush.bf16.xpose.msra.mxu0 0
    %1183 = vmatpush.bf16.xpose.msra.mxu0 0
    %1184 = vmatpush.bf16.xpose.msra.mxu0 0
    %1185 = vmatpush.bf16.xpose.msra.mxu0 0
    %1186 = vmatpush.bf16.xpose.msra.mxu0 0
    %1187 = vmatpush.bf16.xpose.msra.mxu0 %v1178
    %1188 = vmatmul.bf16.gmra.mxu0 %v1175
    %v1189 = vpop.f32.mrf.mxu0
    %v1190 = vadd.f32 %v239, %v1189
    %v1191 = vpop.f32.mrf.mxu0
    %1192 = vdwg.mxu0
    %v1193 = vsel %vm247, %v1167, -inf
    %1194 = vmax.xlane.f32.xlu0 %v1193
    %v1195 = vpop.xlane.xlu0 %1194
    %v1196 = vsel %vm247, %v1190, -inf
    %1197 = vmax.xlane.f32.xlu0 %v1196
    %v1198 = vpop.xlane.xlu0 %1197
    %v1199 = vsub.f32 %v1167, %v1195
    %v1200 = vsub.f32 %v1190, %v1198
    %v1201 = vmul.f32 %v1199, 1.442695
    %v1202 = vpow.pop %v1201
    %v1203 = vmul.f32 %v1200, 1.442695
    %v1204 = vpow.pop %v1203
    %v1205 = vsel %vm247, %v1202, 0.0
    %1206 = vadd.xlane.f32.xlu0 %v1205
    %v1207 = vpop.xlane.xlu0 %1206
    %v1208 = vsel %vm247, %v1204, 0.0
    %1209 = vadd.xlane.f32.xlu0 %v1208
    %v1210 = vpop.xlane.xlu0 %1209
    %v1211 = vrcp.pop %v1207
    %v1212 = vrcp.pop %v1210
    %v1213 = vmul.f32 %v1202, %v1211
    %v1214 = vmul.f32 %v1204, %v1212
    %v1215 = vpack.c.bf16 %v1213, %v1213
    %v1216 = vpack.c.bf16 %v1214, %v1214
    %1217 = vrot.lane.b32.xlu0 %v1035, 56
    %v1218 = vpop.permute.xlu0 %1217
    %v1220 = vsel %vm247, %v1215, 0
    %v1223 = vsel %vm320, %v1218, 0
    %1225 = vmatpush.bf16.msra.mxu0 0
    %1226 = vmatpush.bf16.msra.mxu0 0
    %1227 = vmatpush.bf16.msra.mxu0 0
    %1228 = vmatpush.bf16.msra.mxu0 0
    %1229 = vmatpush.bf16.msra.mxu0 0
    %1230 = vmatpush.bf16.msra.mxu0 0
    %1231 = vmatpush.bf16.msra.mxu0 0
    %1232 = vmatpush.bf16.msra.mxu0 %v1223
    %1233 = vmatmul.bf16.gmra.mxu0 %v1220
    %v1234 = vpop.f32.mrf.mxu0
    %v1235 = vadd.f32 0.0, %v1234
    %v1236 = vpop.f32.mrf.mxu0
    %1237 = vdwg.mxu0
    %1238 = vrot.lane.b32.xlu0 %v1059, 56
    %v1239 = vpop.permute.xlu0 %1238
    %v1241 = vsel %vm247, %v1216, 0
    %v1244 = vsel %vm320, %v1239, 0
    %1246 = vmatpush.bf16.msra.mxu0 0
    %1247 = vmatpush.bf16.msra.mxu0 0
    %1248 = vmatpush.bf16.msra.mxu0 0
    %1249 = vmatpush.bf16.msra.mxu0 0
    %1250 = vmatpush.bf16.msra.mxu0 0
    %1251 = vmatpush.bf16.msra.mxu0 0
    %1252 = vmatpush.bf16.msra.mxu0 0
    %1253 = vmatpush.bf16.msra.mxu0 %v1244
    %1254 = vmatmul.bf16.gmra.mxu0 %v1241
    %v1255 = vpop.f32.mrf.mxu0
    %v1256 = vadd.f32 0.0, %v1255
    %v1257 = vpop.f32.mrf.mxu0
    %1258 = vdwg.mxu0
    %1259 = vrot.lane.b32.xlu0 %v1035, 112
    %v1260 = vpop.permute.xlu0 %1259
    %1261 = vrot.lane.b32.xlu0 %v1035, 80
    %v1262 = vpop.permute.xlu0 %1261
    %v1264 = vsel %vm247, %v1260, 0
    %v1267 = vsel %vm247, %v1262, 0
    %1269 = vmatpush.bf16.xpose.msra.mxu0 0
    %1270 = vmatpush.bf16.xpose.msra.mxu0 0
    %1271 = vmatpush.bf16.xpose.msra.mxu0 0
    %1272 = vmatpush.bf16.xpose.msra.mxu0 0
    %1273 = vmatpush.bf16.xpose.msra.mxu0 0
    %1274 = vmatpush.bf16.xpose.msra.mxu0 0
    %1275 = vmatpush.bf16.xpose.msra.mxu0 0
    %1276 = vmatpush.bf16.xpose.msra.mxu0 %v1267
    %1277 = vmatmul.bf16.gmra.mxu0 %v1264
    %v1278 = vpop.f32.mrf.mxu0
    %v1279 = vadd.f32 %v238, %v1278
    %v1280 = vpop.f32.mrf.mxu0
    %1281 = vdwg.mxu0
    %1282 = vrot.lane.b32.xlu0 %v1059, 112
    %v1283 = vpop.permute.xlu0 %1282
    %1284 = vrot.lane.b32.xlu0 %v1059, 80
    %v1285 = vpop.permute.xlu0 %1284
    %v1287 = vsel %vm247, %v1283, 0
    %v1290 = vsel %vm247, %v1285, 0
    %1292 = vmatpush.bf16.xpose.msra.mxu0 0
    %1293 = vmatpush.bf16.xpose.msra.mxu0 0
    %1294 = vmatpush.bf16.xpose.msra.mxu0 0
    %1295 = vmatpush.bf16.xpose.msra.mxu0 0
    %1296 = vmatpush.bf16.xpose.msra.mxu0 0
    %1297 = vmatpush.bf16.xpose.msra.mxu0 0
    %1298 = vmatpush.bf16.xpose.msra.mxu0 0
    %1299 = vmatpush.bf16.xpose.msra.mxu0 %v1290
    %1300 = vmatmul.bf16.gmra.mxu0 %v1287
    %v1301 = vpop.f32.mrf.mxu0
    %v1302 = vadd.f32 %v239, %v1301
    %v1303 = vpop.f32.mrf.mxu0
    %1304 = vdwg.mxu0
    %v1305 = vsel %vm247, %v1279, -inf
    %1306 = vmax.xlane.f32.xlu0 %v1305
    %v1307 = vpop.xlane.xlu0 %1306
    %v1308 = vsel %vm247, %v1302, -inf
    %1309 = vmax.xlane.f32.xlu0 %v1308
    %v1310 = vpop.xlane.xlu0 %1309
    %v1311 = vsub.f32 %v1279, %v1307
    %v1312 = vsub.f32 %v1302, %v1310
    %v1313 = vmul.f32 %v1311, 1.442695
    %v1314 = vpow.pop %v1313
    %v1315 = vmul.f32 %v1312, 1.442695
    %v1316 = vpow.pop %v1315
    %v1317 = vsel %vm247, %v1314, 0.0
    %1318 = vadd.xlane.f32.xlu0 %v1317
    %v1319 = vpop.xlane.xlu0 %1318
    %v1320 = vsel %vm247, %v1316, 0.0
    %1321 = vadd.xlane.f32.xlu0 %v1320
    %v1322 = vpop.xlane.xlu0 %1321
    %v1323 = vrcp.pop %v1319
    %v1324 = vrcp.pop %v1322
    %v1325 = vmul.f32 %v1314, %v1323
    %v1326 = vmul.f32 %v1316, %v1324
    %v1327 = vpack.c.bf16 %v1325, %v1325
    %v1328 = vpack.c.bf16 %v1326, %v1326
    %1329 = vrot.lane.b32.xlu0 %v1035, 48
    %v1330 = vpop.permute.xlu0 %1329
    %v1332 = vsel %vm247, %v1327, 0
    %v1335 = vsel %vm320, %v1330, 0
    %1337 = vmatpush.bf16.msra.mxu0 0
    %1338 = vmatpush.bf16.msra.mxu0 0
    %1339 = vmatpush.bf16.msra.mxu0 0
    %1340 = vmatpush.bf16.msra.mxu0 0
    %1341 = vmatpush.bf16.msra.mxu0 0
    %1342 = vmatpush.bf16.msra.mxu0 0
    %1343 = vmatpush.bf16.msra.mxu0 0
    %1344 = vmatpush.bf16.msra.mxu0 %v1335
    %1345 = vmatmul.bf16.gmra.mxu0 %v1332
    %v1346 = vpop.f32.mrf.mxu0
    %v1347 = vadd.f32 0.0, %v1346
    %v1348 = vpop.f32.mrf.mxu0
    %1349 = vdwg.mxu0
    %1350 = vrot.lane.b32.xlu0 %v1059, 48
    %v1351 = vpop.permute.xlu0 %1350
    %v1353 = vsel %vm247, %v1328, 0
    %v1356 = vsel %vm320, %v1351, 0
    %1358 = vmatpush.bf16.msra.mxu0 0
    %1359 = vmatpush.bf16.msra.mxu0 0
    %1360 = vmatpush.bf16.msra.mxu0 0
    %1361 = vmatpush.bf16.msra.mxu0 0
    %1362 = vmatpush.bf16.msra.mxu0 0
    %1363 = vmatpush.bf16.msra.mxu0 0
    %1364 = vmatpush.bf16.msra.mxu0 0
    %1365 = vmatpush.bf16.msra.mxu0 %v1356
    %1366 = vmatmul.bf16.gmra.mxu0 %v1353
    %v1367 = vpop.f32.mrf.mxu0
    %v1368 = vadd.f32 0.0, %v1367
    %v1369 = vpop.f32.mrf.mxu0
    %1370 = vdwg.mxu0
    %1371 = vrot.lane.b32.xlu0 %v1035, 104
    %v1372 = vpop.permute.xlu0 %1371
    %1373 = vrot.lane.b32.xlu0 %v1035, 72
    %v1374 = vpop.permute.xlu0 %1373
    %v1376 = vsel %vm247, %v1372, 0
    %v1379 = vsel %vm247, %v1374, 0
    %1381 = vmatpush.bf16.xpose.msra.mxu0 0
    %1382 = vmatpush.bf16.xpose.msra.mxu0 0
    %1383 = vmatpush.bf16.xpose.msra.mxu0 0
    %1384 = vmatpush.bf16.xpose.msra.mxu0 0
    %1385 = vmatpush.bf16.xpose.msra.mxu0 0
    %1386 = vmatpush.bf16.xpose.msra.mxu0 0
    %1387 = vmatpush.bf16.xpose.msra.mxu0 0
    %1388 = vmatpush.bf16.xpose.msra.mxu0 %v1379
    %1389 = vmatmul.bf16.gmra.mxu0 %v1376
    %v1390 = vpop.f32.mrf.mxu0
    %v1391 = vadd.f32 %v238, %v1390
    %v1392 = vpop.f32.mrf.mxu0
    %1393 = vdwg.mxu0
    %1394 = vrot.lane.b32.xlu0 %v1059, 104
    %v1395 = vpop.permute.xlu0 %1394
    %1396 = vrot.lane.b32.xlu0 %v1059, 72
    %v1397 = vpop.permute.xlu0 %1396
    %v1399 = vsel %vm247, %v1395, 0
    %v1402 = vsel %vm247, %v1397, 0
    %1404 = vmatpush.bf16.xpose.msra.mxu0 0
    %1405 = vmatpush.bf16.xpose.msra.mxu0 0
    %1406 = vmatpush.bf16.xpose.msra.mxu0 0
    %1407 = vmatpush.bf16.xpose.msra.mxu0 0
    %1408 = vmatpush.bf16.xpose.msra.mxu0 0
    %1409 = vmatpush.bf16.xpose.msra.mxu0 0
    %1410 = vmatpush.bf16.xpose.msra.mxu0 0
    %1411 = vmatpush.bf16.xpose.msra.mxu0 %v1402
    %1412 = vmatmul.bf16.gmra.mxu0 %v1399
    %v1413 = vpop.f32.mrf.mxu0
    %v1414 = vadd.f32 %v239, %v1413
    %v1415 = vpop.f32.mrf.mxu0
    %1416 = vdwg.mxu0
    %v1417 = vsel %vm247, %v1391, -inf
    %1418 = vmax.xlane.f32.xlu0 %v1417
    %v1419 = vpop.xlane.xlu0 %1418
    %v1420 = vsel %vm247, %v1414, -inf
    %1421 = vmax.xlane.f32.xlu0 %v1420
    %v1422 = vpop.xlane.xlu0 %1421
    %v1423 = vsub.f32 %v1391, %v1419
    %v1424 = vsub.f32 %v1414, %v1422
    %v1425 = vmul.f32 %v1423, 1.442695
    %v1426 = vpow.pop %v1425
    %v1427 = vmul.f32 %v1424, 1.442695
    %v1428 = vpow.pop %v1427
    %v1429 = vsel %vm247, %v1426, 0.0
    %1430 = vadd.xlane.f32.xlu0 %v1429
    %v1431 = vpop.xlane.xlu0 %1430
    %v1432 = vsel %vm247, %v1428, 0.0
    %1433 = vadd.xlane.f32.xlu0 %v1432
    %v1434 = vpop.xlane.xlu0 %1433
    %v1435 = vrcp.pop %v1431
    %v1436 = vrcp.pop %v1434
    %v1437 = vmul.f32 %v1426, %v1435
    %v1438 = vmul.f32 %v1428, %v1436
    %v1439 = vpack.c.bf16 %v1437, %v1437
    %v1440 = vpack.c.bf16 %v1438, %v1438
    %1441 = vrot.lane.b32.xlu0 %v1035, 40
    %v1442 = vpop.permute.xlu0 %1441
    %v1444 = vsel %vm247, %v1439, 0
    %v1447 = vsel %vm320, %v1442, 0
    %1449 = vmatpush.bf16.msra.mxu0 0
    %1450 = vmatpush.bf16.msra.mxu0 0
    %1451 = vmatpush.bf16.msra.mxu0 0
    %1452 = vmatpush.bf16.msra.mxu0 0
    %1453 = vmatpush.bf16.msra.mxu0 0
    %1454 = vmatpush.bf16.msra.mxu0 0
    %1455 = vmatpush.bf16.msra.mxu0 0
    %1456 = vmatpush.bf16.msra.mxu0 %v1447
    %1457 = vmatmul.bf16.gmra.mxu0 %v1444
    %v1458 = vpop.f32.mrf.mxu0
    %v1459 = vadd.f32 0.0, %v1458
    %v1460 = vpop.f32.mrf.mxu0
    %1461 = vdwg.mxu0
    %1462 = vrot.lane.b32.xlu0 %v1059, 40
    %v1463 = vpop.permute.xlu0 %1462
    %v1465 = vsel %vm247, %v1440, 0
    %v1468 = vsel %vm320, %v1463, 0
    %1470 = vmatpush.bf16.msra.mxu0 0
    %1471 = vmatpush.bf16.msra.mxu0 0
    %1472 = vmatpush.bf16.msra.mxu0 0
    %1473 = vmatpush.bf16.msra.mxu0 0
    %1474 = vmatpush.bf16.msra.mxu0 0
    %1475 = vmatpush.bf16.msra.mxu0 0
    %1476 = vmatpush.bf16.msra.mxu0 0
    %1477 = vmatpush.bf16.msra.mxu0 %v1468
    %1478 = vmatmul.bf16.gmra.mxu0 %v1465
    %v1479 = vpop.f32.mrf.mxu0
    %v1480 = vadd.f32 0.0, %v1479
    %v1481 = vpop.f32.mrf.mxu0
    %1482 = vdwg.mxu0
    %1485 = vrot.lane.b32.xlu0 %v1235, 8
    %v1486 = vpop.permute.xlu0 %1485
    %1487 = vrot.lane.b32.xlu0 %v1256, 8
    %v1488 = vpop.permute.xlu0 %1487
    %1493 = vrot.lane.b32.xlu0 %v1347, 16
    %v1494 = vpop.permute.xlu0 %1493
    %1495 = vrot.lane.b32.xlu0 %v1368, 16
    %v1496 = vpop.permute.xlu0 %1495
    %1501 = vrot.lane.b32.xlu0 %v1459, 24
    %v1502 = vpop.permute.xlu0 %1501
    %1503 = vrot.lane.b32.xlu0 %v1480, 24
    %v1504 = vpop.permute.xlu0 %1503
    %v1507 = vsel %vm247, %v1123, %v1486
    %v1508 = vsel %vm247, %v1144, %v1488
    %v1509 = vsel %vm720, %v1507, %v1494
    %v1510 = vsel %vm720, %v1508, %v1496
    %v1511 = vsel %vm723, %v1509, %v1502
    %v1512 = vsel %vm723, %v1510, %v1504
    %s1513 = scalar_lea.vmem %s8, 16
    %v1514 = vld [vmem:[%s1513] sm:$0xf]
    %v1515 = vld [vmem:[%s1513 + $0x4] sm:$0xf]
    %v1516 = vld [vmem:[%s1513 + $0x8] sm:$0xf]
    %v1517 = vld [vmem:[%s1513 + $0xc] sm:$0xf]
    %v1518 = vpack.c.bf16 %v1512, %v1511
    %s1519 = scalar_lea.vmem %s9, 1
    %v1520 = vld [vmem:[%s1519] sm:$0x1]
    %v1522 = vperm.slane %v1520, 0
    %v1528 = vunpack.c.l.b16 %v1514
    %v1529 = vunpack.c.l.b16 %v1515
    %v1530 = vunpack.c.l.b16 %v1516
    %v1531 = vunpack.c.l.b16 %v1517
    %v1532 = vpack.c.b16 %v1529, %v1528
    %v1533 = vpack.c.b16 %v1531, %v1530
    %v1537 = vsel %vm126, %v1518, 0
    %1539 = vmatpush.bf16.msra.mxu0 0
    %1540 = vmatpush.bf16.msra.mxu0 0
    %1541 = vmatpush.bf16.msra.mxu0 0
    %1542 = vmatpush.bf16.msra.mxu0 0
    %1543 = vmatpush.bf16.msra.mxu0 0
    %1544 = vmatpush.bf16.msra.mxu0 0
    %1545 = vmatpush.bf16.msra.mxu0 %v1533
    %1546 = vmatpush.bf16.msra.mxu0 %v1532
    %1547 = vmatmul.bf16.gmra.mxu0 %v1537
    %v1548 = vpop.f32.mrf.mxu0
    %v1549 = vadd.f32 %v1522, %v1548
    %v1550 = vpop.f32.mrf.mxu0
    %v1551 = vadd.f32 %v1522, %v1550
    %1552 = vdwg.mxu0
    %v1553 = vadd.f32 %v989, %v1549
    %v1554 = vadd.f32 %v990, %v1551
    %s1555 = scalar_lea.vmem %s10, 1
    %v1556 = vld [vmem:[%s1555] sm:$0x1]
    %s1557 = scalar_lea.vmem %s11, 1
    %v1558 = vld [vmem:[%s1557] sm:$0x1]
    %v1559 = vsel %vm126, %v1553, 0.0
    %1560 = vadd.xlane.f32.xlu0 %v1559
    %v1561 = vpop.xlane.xlu0 %1560
    %v1562 = vsel %vm126, %v1554, 0.0
    %1563 = vadd.xlane.f32.xlu0 %v1562
    %v1564 = vpop.xlane.xlu0 %1563
    %v1565 = vmul.f32 %v1561, %v139
    %v1566 = vmul.f32 %v1564, %v139
    %v1567 = vsub.f32 %v1553, %v1565
    %v1568 = vsub.f32 %v1554, %v1566
    %v1569 = vmul.f32 %v1567, %v1567
    %v1570 = vmul.f32 %v1568, %v1568
    %v1571 = vsel %vm126, %v1569, 0.0
    %1572 = vadd.xlane.f32.xlu0 %v1571
    %v1573 = vpop.xlane.xlu0 %1572
    %v1574 = vsel %vm126, %v1570, 0.0
    %1575 = vadd.xlane.f32.xlu0 %v1574
    %v1576 = vpop.xlane.xlu0 %1575
    %v1577 = vmul.f32 %v1573, %v139
    %v1578 = vmul.f32 %v1576, %v139
    %v1579 = vadd.f32 %v1577, 1e-07
    %v1580 = vadd.f32 %v1578, 1e-07
    %v1581 = vrsqrt.pop %v1579
    %v1582 = vmul.f32 %v1581, %v1579
    %v1583 = vmul.f32 %v1582, %v1581
    %v1584 = vmul.f32 0.5, %v1583
    %v1585 = vsub.f32 1.5, %v1584
    %v1586 = vmul.f32 %v1581, %v1585
    %vm1587 = vweird.f32 %v1579
    %vm1588 = vweird.f32 %v1581
    %vm1589 = vmor %vm1587, %vm1588
    %v1590 = vsel %vm1589, %v1581, %v1586
    %v1591 = vrsqrt.pop %v1580
    %v1592 = vmul.f32 %v1591, %v1580
    %v1593 = vmul.f32 %v1592, %v1591
    %v1594 = vmul.f32 0.5, %v1593
    %v1595 = vsub.f32 1.5, %v1594
    %v1596 = vmul.f32 %v1591, %v1595
    %vm1597 = vweird.f32 %v1580
    %vm1598 = vweird.f32 %v1591
    %vm1599 = vmor %vm1597, %vm1598
    %v1600 = vsel %vm1599, %v1591, %v1596
    %v1601 = vmul.f32 %v1567, %v1590
    %v1602 = vmul.f32 %v1568, %v1600
    %v1604 = vperm.slane %v1556, 0
    %v1606 = vmul.f32 %v1601, %v1604
    %v1607 = vmul.f32 %v1602, %v1604
    %v1609 = vperm.slane %v1558, 0
    %v1611 = vadd.f32 %v1606, %v1609
    %v1612 = vadd.f32 %v1607, %v1609
    %s1613 = scalar_lea.vmem %s12, 16
    %v1614 = vld [vmem:[%s1613] sm:$0xf]
    %v1615 = vld [vmem:[%s1613 + $0x4] sm:$0xf]
    %v1616 = vld [vmem:[%s1613 + $0x8] sm:$0xf]
    %v1617 = vld [vmem:[%s1613 + $0xc] sm:$0xf]
    %v1618 = vpack.c.bf16 %v1612, %v1611
    %s1619 = scalar_lea.vmem %s13, 1
    %v1620 = vld [vmem:[%s1619] sm:$0x1]
    %v1622 = vperm.slane %v1620, 0
    %v1628 = vunpack.c.l.b16 %v1614
    %v1629 = vunpack.c.l.b16 %v1615
    %v1630 = vunpack.c.l.b16 %v1616
    %v1631 = vunpack.c.l.b16 %v1617
    %v1632 = vpack.c.b16 %v1629, %v1628
    %v1633 = vpack.c.b16 %v1631, %v1630
    %v1637 = vsel %vm126, %v1618, 0
    %1639 = vmatpush.bf16.msra.mxu0 0
    %1640 = vmatpush.bf16.msra.mxu0 0
    %1641 = vmatpush.bf16.msra.mxu0 0
    %1642 = vmatpush.bf16.msra.mxu0 0
    %1643 = vmatpush.bf16.msra.mxu0 0
    %1644 = vmatpush.bf16.msra.mxu0 0
    %1645 = vmatpush.bf16.msra.mxu0 %v1633
    %1646 = vmatpush.bf16.msra.mxu0 %v1632
    %1647 = vmatmul.bf16.gmra.mxu0 %v1637
    %v1648 = vpop.f32.mrf.mxu0
    %v1649 = vadd.f32 %v1622, %v1648
    %v1650 = vpop.f32.mrf.mxu0
    %v1651 = vadd.f32 %v1622, %v1650
    %1652 = vdwg.mxu0
    %v1653 = vmul.f32 %v1649, %v1649
    %v1654 = vmul.f32 %v1651, %v1651
    %v1655 = vmul.f32 %v1649, %v1653
    %v1656 = vmul.f32 %v1651, %v1654
    %v1657 = vmul.f32 %v1655, 0.044715
    %v1658 = vmul.f32 %v1656, 0.044715
    %v1659 = vadd.f32 %v1649, %v1657
    %v1660 = vadd.f32 %v1651, %v1658
    %v1661 = vmul.f32 %v1659, 0.7978846
    %v1662 = vmul.f32 %v1660, 0.7978846
    %v1663 = vtanh.pop %v1661
    %v1664 = vtanh.pop %v1662
    %v1665 = vadd.f32 %v1663, 1.0
    %v1666 = vadd.f32 %v1664, 1.0
    %v1667 = vmul.f32 %v1665, 0.5
    %v1668 = vmul.f32 %v1666, 0.5
    %v1669 = vmul.f32 %v1649, %v1667
    %v1670 = vmul.f32 %v1651, %v1668
    %s1671 = scalar_lea.vmem %s14, 32
    %v1672 = vld [vmem:[%s1671] sm:$0xf]
    %v1673 = vld [vmem:[%s1671 + $0x4] sm:$0xf]
    %v1674 = vld [vmem:[%s1671 + $0x8] sm:$0xf]
    %v1675 = vld [vmem:[%s1671 + $0xc] sm:$0xf]
    %v1676 = vld [vmem:[%s1671 + $0x10] sm:$0xf]
    %v1677 = vld [vmem:[%s1671 + $0x14] sm:$0xf]
    %v1678 = vld [vmem:[%s1671 + $0x18] sm:$0xf]
    %v1679 = vld [vmem:[%s1671 + $0x1c] sm:$0xf]
    %v1680 = vpack.c.bf16 %v1670, %v1669
    %s1681 = scalar_lea.vmem %s15, 1
    %v1682 = vld [vmem:[%s1681] sm:$0x1]
    %v1684 = vperm.slane %v1682, 0
    %v1694 = vunpack.c.l.b16 %v1672
    %v1695 = vunpack.c.l.b16 %v1673
    %v1696 = vunpack.c.l.b16 %v1674
    %v1697 = vunpack.c.l.b16 %v1675
    %v1698 = vunpack.c.l.b16 %v1676
    %v1699 = vunpack.c.l.b16 %v1677
    %v1700 = vunpack.c.l.b16 %v1678
    %v1701 = vunpack.c.l.b16 %v1679
    %v1702 = vpack.c.b16 %v1695, %v1694
    %v1703 = vpack.c.b16 %v1697, %v1696
    %v1704 = vpack.c.b16 %v1699, %v1698
    %v1705 = vpack.c.b16 %v1701, %v1700
    %v1711 = vsel %vm915, %v1680, 0
    %1713 = vmatpush.bf16.msra.mxu0 0
    %1714 = vmatpush.bf16.msra.mxu0 0
    %1715 = vmatpush.bf16.msra.mxu0 0
    %1716 = vmatpush.bf16.msra.mxu0 0
    %1717 = vmatpush.bf16.msra.mxu0 %v1705
    %1718 = vmatpush.bf16.msra.mxu0 %v1704
    %1719 = vmatpush.bf16.msra.mxu0 %v1703
    %1720 = vmatpush.bf16.msra.mxu0 %v1702
    %1721 = vmatmul.bf16.gmra.mxu0 %v1711
    %v1722 = vpop.f32.mrf.mxu0
    %v1723 = vadd.f32 %v1684, %v1722
    %v1724 = vpop.f32.mrf.mxu0
    %v1725 = vadd.f32 %v1684, %v1724
    %1726 = vdwg.mxu0
    %v1727 = vadd.f32 %v1611, %v1723
    %v1728 = vadd.f32 %v1612, %v1725
    %s1729 = scalar_lea.vmem %s16, 1
    %v1730 = vld [vmem:[%s1729] sm:$0x1]
    %s1731 = scalar_lea.vmem %s17, 1
    %v1732 = vld [vmem:[%s1731] sm:$0x1]
    %v1733 = vsel %vm126, %v1727, 0.0
    %1734 = vadd.xlane.f32.xlu0 %v1733
    %v1735 = vpop.xlane.xlu0 %1734
    %v1736 = vsel %vm126, %v1728, 0.0
    %1737 = vadd.xlane.f32.xlu0 %v1736
    %v1738 = vpop.xlane.xlu0 %1737
    %v1739 = vmul.f32 %v1735, %v139
    %v1740 = vmul.f32 %v1738, %v139
    %v1741 = vsub.f32 %v1727, %v1739
    %v1742 = vsub.f32 %v1728, %v1740
    %v1743 = vmul.f32 %v1741, %v1741
    %v1744 = vmul.f32 %v1742, %v1742
    %v1745 = vsel %vm126, %v1743, 0.0
    %1746 = vadd.xlane.f32.xlu0 %v1745
    %v1747 = vpop.xlane.xlu0 %1746
    %v1748 = vsel %vm126, %v1744, 0.0
    %1749 = vadd.xlane.f32.xlu0 %v1748
    %v1750 = vpop.xlane.xlu0 %1749
    %v1751 = vmul.f32 %v1747, %v139
    %v1752 = vmul.f32 %v1750, %v139
    %v1753 = vadd.f32 %v1751, 1e-07
    %v1754 = vadd.f32 %v1752, 1e-07
    %v1755 = vrsqrt.pop %v1753
    %v1756 = vmul.f32 %v1755, %v1753
    %v1757 = vmul.f32 %v1756, %v1755
    %v1758 = vmul.f32 0.5, %v1757
    %v1759 = vsub.f32 1.5, %v1758
    %v1760 = vmul.f32 %v1755, %v1759
    %vm1761 = vweird.f32 %v1753
    %vm1762 = vweird.f32 %v1755
    %vm1763 = vmor %vm1761, %vm1762
    %v1764 = vsel %vm1763, %v1755, %v1760
    %v1765 = vrsqrt.pop %v1754
    %v1766 = vmul.f32 %v1765, %v1754
    %v1767 = vmul.f32 %v1766, %v1765
    %v1768 = vmul.f32 0.5, %v1767
    %v1769 = vsub.f32 1.5, %v1768
    %v1770 = vmul.f32 %v1765, %v1769
    %vm1771 = vweird.f32 %v1754
    %vm1772 = vweird.f32 %v1765
    %vm1773 = vmor %vm1771, %vm1772
    %v1774 = vsel %vm1773, %v1765, %v1770
    %v1775 = vmul.f32 %v1741, %v1764
    %v1776 = vmul.f32 %v1742, %v1774
    %v1778 = vperm.slane %v1730, 0
    %v1780 = vmul.f32 %v1775, %v1778
    %v1781 = vmul.f32 %v1776, %v1778
    %v1783 = vperm.slane %v1732, 0
    %v1785 = vadd.f32 %v1780, %v1783
    %v1786 = vadd.f32 %v1781, %v1783
    %v1788 = vrot.slane %v1786, 7
    %vm1790 = vcmask 1040384
    %v1791 = vsel %vm1790, %v1785, %v1788
    %v1792 = vld [vmem:[%s18] sm:$0xf]
    %v1793 = vld [vmem:[%s18 + $0x4] sm:$0xf]
    %v1794 = vld [vmem:[%s18 + $0x8] sm:$0xf]
    %v1795 = vld [vmem:[%s18 + $0xc] sm:$0xf]
    %v1796 = vpack.c.bf16 %v1791, %v1791
    %v1797 = vld [vmem:[%s19] sm:$0x1]
    %v1799 = vperm.slane %v1797, 0
    %v1805 = vunpack.c.l.b16 %v1792
    %v1806 = vunpack.c.l.b16 %v1793
    %v1807 = vunpack.c.l.b16 %v1794
    %v1808 = vunpack.c.l.b16 %v1795
    %v1809 = vpack.c.b16 %v1806, %v1805
    %v1810 = vpack.c.b16 %v1808, %v1807
    %v1814 = vsel %vm126, %v1796, 0
    %1816 = vmatpush.bf16.msra.mxu0 0
    %1817 = vmatpush.bf16.msra.mxu0 0
    %1818 = vmatpush.bf16.msra.mxu0 0
    %1819 = vmatpush.bf16.msra.mxu0 0
    %1820 = vmatpush.bf16.msra.mxu0 0
    %1821 = vmatpush.bf16.msra.mxu0 0
    %1822 = vmatpush.bf16.msra.mxu0 %v1810
    %1823 = vmatpush.bf16.msra.mxu0 %v1809
    %1824 = vmatmul.bf16.gmra.mxu0 %v1814
    %v1825 = vpop.f32.mrf.mxu0
    %v1826 = vadd.f32 %v1799, %v1825
    %v1827 = vpop.f32.mrf.mxu0
    %1828 = vdwg.mxu0
    %vm1829 = vcmask 41984
    %v1830 = vsel %vm1829, %v1826, -inf
    %1831 = vmax.xlane.f32.xlu0 %v1830
    %v1832 = vpop.xlane.xlu0 %1831
    %v1833 = vsub.f32 %v1826, %v1832
    %v1834 = vmul.f32 %v1833, 1.442695
    %v1835 = vpow.pop %v1834
    %v1836 = vsel %vm1829, %v1835, 0.0
    %1837 = vadd.xlane.f32.xlu0 %v1836
    %v1838 = vpop.xlane.xlu0 %1837
    %v1839 = vrcp.pop %v1838
    %v1840 = vmul.f32 %v1838, %v1839
    %v1841 = vsub.f32 1.0, %v1840
    %v1842 = vmul.f32 %v1839, %v1841
    %v1843 = vadd.f32 %v1839, %v1842
    %vm1844 = vweird.f32 %v1838
    %vm1845 = vweird.f32 %v1839
    %vm1846 = vmor %vm1844, %vm1845
    %v1847 = vsel %vm1846, %v1839, %v1843
    %v1848 = vand.u32 2147483647, %v1838
    %vm1849 = vcmp.eq.f32.partialorder %v1848, 8.507059e+37
    %v1850 = vand.u32 %v1838, 2147483648
    %v1851 = vor.u32 1.1754944e-38, %v1850
    %v1852 = vsel %vm1849, %v1851, %v1847
    %v1853 = vmul.f32 %v1835, %v1852
    %1854 = vst.msk [vmem:[#allocation2] sm:$0x3] %vm1829, %v1853
    // Predicated region
    $region82: #{custom_model_forward.1} parent=1 // pred_check
      _
    $region83: #{custom_model_forward.1} parent=1 // pred_check_branch
      %1856 = sbr.rel (0) target = $region85
    $region84: #{custom_model_forward.1} parent=1 // pred_region
      %1858 = vsyncadd [#allocation3], 0
      %s1860 = sshll.u32 [#allocation2], 4
      %s1861 = int_to_ptr.vmem [resolvable:$true] %s1860
      %s1862 = sshll.u32 %s20, 4
      %s1863 = int_to_ptr.hbm [resolvable:$true] %s1862
      %1865 = dma.vmem_to_hbm [thread:$0]  %s1861, 32, %s1863, [#allocation3]
    $region85: #{custom_model_forward.1} parent=1 // pred_fallthru
      _
    // Predicated region
    $region86: #{custom_model_forward.1} parent=1 // pred_check
      _
    $region87: #{custom_model_forward.1} parent=1 // pred_check_branch
      %1867 = sbr.rel (0) target = $region89
    $region88: #{custom_model_forward.1} parent=1 // pred_region
      %1869 = dma.done [#allocation3], 32
    $region89: #{custom_model_forward.1} parent=1 // pred_fallthru
      _
    %1870 = vsyncpa [#allocation3], 1

</llo_original>
